<compile_context>
chip_gen: v7x
topology: tpu7x:2x2x1
jax: 0.10.0
libtpu: 0.0.40
codegen_flags: <defaults>
</compile_context>

<pallas_src>
import jax
import jax.numpy as jnp
from jax.experimental import pallas as pl
from jax.experimental.pallas import tpu as pltpu

PAD = 0


# ----------------------------- config (mirrors `conf`) -----------------------------
class conf:
    vocab_sz = 128
    word_dim = 32
    hidden_dim = 32
    att_dim = 16
    aspect_dim = 8          # == asp_dim (beta_u is replaced by ABAE aspect embedding)
    asp_dim = 8
    abae_vocab_sz = 64
    abae_word_dim = 16
    seq_len = 8
    num_neg_sent = 2
    user_seq_num = 2
    item_seq_num = 2
    num_users = 6
    num_items = 6
    rev_len = 4
    dropout = 0.1           # forward implemented in eval mode -> dropout is identity


# ----------------------------- deterministic parameter init -----------------------------
def _xavier(key, shape):
    # shape follows the PyTorch nn.Linear convention: (out_features, in_features)
    fan_out, fan_in = shape
    a = (6.0 / (fan_in + fan_out)) ** 0.5
    return jax.random.uniform(key, shape, jnp.float32, -a, a)


def init_params(key):
    ks = jax.random.split(key, 24)
    H, Wd, Att, Asp, V = (conf.hidden_dim, conf.word_dim, conf.att_dim,
                          conf.aspect_dim, conf.vocab_sz)
    D = conf.abae_word_dim
    p = {
        # expansion_net / decoder embeddings
        "word_embedding": 0.1 * jax.random.normal(ks[0], (V, Wd), jnp.float32),
        # encoder_1
        "gamma_user": 0.3 * jax.random.normal(ks[1], (conf.num_users, Att), jnp.float32),
        "gamma_item": 0.3 * jax.random.normal(ks[2], (conf.num_items, Att), jnp.float32),
        "beta_user": 0.3 * jax.random.normal(ks[3], (conf.num_users, Asp), jnp.float32),
        "beta_item": 0.3 * jax.random.normal(ks[4], (conf.num_items, Asp), jnp.float32),
        "W3": _xavier(ks[5], (H, 2 * Att)), "b3": jnp.zeros((H,), jnp.float32),
        "W4": _xavier(ks[6], (H, 2 * Asp)), "b4": jnp.zeros((H,), jnp.float32),
        # encoder_2 (ABAE)
        "abae_word_embedding": 0.1 * jax.random.normal(ks[7], (conf.abae_vocab_sz, D), jnp.float32),
        "W_M": _xavier(ks[8], (D, D)),
        "W_W": _xavier(ks[9], (conf.asp_dim, D)), "b_W": jnp.zeros((conf.asp_dim,), jnp.float32),
        "W_T": _xavier(ks[10], (D, conf.asp_dim)),
        # decoder GRU (biases are zero by reinit(); omitted from the kernel)
        "gru_w_ih": _xavier(ks[11], (3 * H, Wd)),
        "gru_w_hh": _xavier(ks[12], (3 * H, H)),
        # decoder linears (biases zero by reinit(), still threaded through)
        "W10": _xavier(ks[13], (1, Att + H)), "b10": jnp.zeros((1,), jnp.float32),
        "W11": _xavier(ks[14], (Asp, 2 * Asp)), "b11": jnp.zeros((Asp,), jnp.float32),
        "W12": _xavier(ks[15], (Asp, Asp + Wd + H)), "b12": jnp.zeros((Asp,), jnp.float32),
        "W13": _xavier(ks[16], (V, H + Att)), "b13": jnp.zeros((V,), jnp.float32),
    }
    return p


# ----------------------------- Pallas kernel 1: ABAE encoder_2 core -----------------------------
def abae_pallas(e_w, mask, y_s, w_m, w_w_T, b_w_row):
    N, S, D = e_w.shape
    Asp = w_w_T.shape[1]

    def kernel(e_ref, m_ref, y_ref, wm_ref, ww_ref, bw_ref, p_ref, z_ref):
        ew = e_ref[...]                                                       # (N, S, D)
        # dx[n,s] = <transform_M(e_w)[n,s,:], y_s[n,:]>  ==  <e_w[n,s,:], (y_s @ W_M)[n,:]>
        q = jnp.dot(y_ref[...], wm_ref[...], preferred_element_type=jnp.float32)  # (N, D)
        dx = jnp.sum(ew * q[:, None, :], axis=2)                              # (N, S)
        dx = jnp.where(dx < 80.0, dx, 0.0)                                    # dx_mask * dx
        ax2 = jnp.exp(dx) * m_ref[...]
        ax3 = jnp.sum(ax2, axis=1, keepdims=True) + 1e-6
        ax4 = ax2 / ax3                                                       # (N, S)
        z_s = jnp.sum(ew * ax4[:, :, None], axis=1)                           # (N, D)
        logits = jnp.dot(z_s, ww_ref[...], preferred_element_type=jnp.float32) + bw_ref[...]
        p_ref[...] = jax.nn.softmax(logits, axis=1)
        z_ref[...] = z_s

    cost = pl.CostEstimate(
        flops=int(2 * N * D * D + 6 * N * S * D + 2 * N * D * Asp + 8 * N * S + 6 * N * Asp),
        transcendentals=int(N * S + N * Asp),
        bytes_accessed=int(4 * (N * S * D + N * S + 2 * N * D + D * D + D * Asp + Asp
                                + N * Asp + N * D)),
    )
    p_t, z_s = pl.pallas_call(
        kernel,
        grid=(1,),
        in_specs=[
            pl.BlockSpec((N, S, D), lambda i: (0, 0, 0)),
            pl.BlockSpec((N, S), lambda i: (0, 0)),
            pl.BlockSpec((N, D), lambda i: (0, 0)),
            pl.BlockSpec((D, D), lambda i: (0, 0)),
            pl.BlockSpec((D, Asp), lambda i: (0, 0)),
            pl.BlockSpec((1, Asp), lambda i: (0, 0)),
        ],
        out_specs=(
            pl.BlockSpec((N, Asp), lambda i: (0, 0)),
            pl.BlockSpec((N, D), lambda i: (0, 0)),
        ),
        out_shape=(
            jax.ShapeDtypeStruct((N, Asp), jnp.float32),
            jax.ShapeDtypeStruct((N, D), jnp.float32),
        ),
        compiler_params=pltpu.CompilerParams(dimension_semantics=("arbitrary",)),
        cost_estimate=cost,
    )(e_w, mask, y_s, w_m, w_w_T, b_w_row)
    return p_t, z_s


# ----------------------------- Pallas kernel 2: FUSED decoder -----------------------------
# one pallas_call = bulk x @ W_ih  +  GRU recurrence  +  batched output head (eq.10/11/12/13)
def make_fused_decoder(T, B, Wd, H, V):
    TB = T * B

    def kernel(x2_ref, h0_ref, wih_ref, whh_ref, whead_ref, kuki_ref, gcat_ref,
               out_ref, hT_ref, hs_ref):
        # ---- bulk input-side GRU projection: one matmul, off the serial h->h chain ----
        x2 = x2_ref[...]                                                     # (TB, Wd)
        xg = jnp.dot(x2, wih_ref[...], preferred_element_type=jnp.float32)   # (TB, 3H) [r|z|n]
        xg_rz = xg[:, :2 * H]            # one-time lane slices (not per-step)
        xg_n = xg[:, 2 * H:]

        # ---- GRU recurrence: single fused h @ W_hh per step, 2 lane slices per step ----
        whh = whh_ref[...]                                                   # (H, 3H)
        h = h0_ref[...]                                                      # (B, H)
        for t in range(T):                                                   # static unroll (T tiny)
            gh = jnp.dot(h, whh, preferred_element_type=jnp.float32)         # (B, 3H)
            rz = jax.nn.sigmoid(xg_rz[t * B:(t + 1) * B, :] + gh[:, :2 * H])  # r|z in one sigmoid
            r = rz[:, :H]
            z = rz[:, H:]
            n = jnp.tanh(xg_n[t * B:(t + 1) * B, :] + r * gh[:, 2 * H:])
            h = (1.0 - z) * n + z * h
            hs_ref[t * B:(t + 1) * B, :] = h
        hT_ref[...] = h                                                      # final hidden state

        # ---- batched output head: ONE (TB, H+Wd) @ (H+Wd, 2V) matmul ----
        # columns [:V]  = fused eq.13 h-part + aspect-projected eq.12 (h,x)-parts
        # column  [V]   = eq.10 h-key vector (zero rows for the x half), so hw is free in
        #                 the same MXU pass (256-lane packing; no 1-lane masked matmul)
        hx = jnp.concatenate([hs_ref[...], x2], axis=1)                      # (TB, H+Wd)
        res = jnp.dot(hx, whead_ref[...], preferred_element_type=jnp.float32)  # (TB, 2V)
        acc = res[:, :V]
        hw = res[:, V:V + 1]                                                 # (TB, 1)

        ku = kuki_ref[:, 0:1]                                                # (B, 1)
        ki = kuki_ref[:, 1:2]
        gu13 = gcat_ref[0]                                                   # (B, V) gamma_u @ W13_a
        gi13 = gcat_ref[1]                                                   # (B, V) gamma_i @ W13_a
        cvec = gcat_ref[2]                                                   # (B, V) time-invariant offset
        # eq.10 two-way softmax (with the original 1e-6 epsilon) applied per time-step row
        # block so the (B, .) constants broadcast directly — no tiled HBM inputs.
        for t in range(T):
            rs = slice(t * B, (t + 1) * B)
            eu = jnp.exp(jnp.tanh(ku + hw[rs, :]))
            ei = jnp.exp(jnp.tanh(ki + hw[rs, :]))
            inv = pl.reciprocal(eu + ei + 1e-6, approx=True)                 # EUP slot
            out_ref[rs, :] = acc[rs, :] + (eu * inv) * gu13 + (ei * inv) * gi13 + cvec
        # TODO(synk): linear_x(hidden) in the PyTorch decoder is dead (unused by its return); omitted.

    cost = pl.CostEstimate(
        flops=int(2 * TB * Wd * 3 * H + T * 2 * B * H * 3 * H + 2 * TB * (H + Wd) * 2 * V
                  + 20 * TB * H + 10 * TB * V),
        transcendentals=int(3 * T * B * H + 5 * TB),
        bytes_accessed=int(4 * (TB * Wd + B * H + Wd * 3 * H + H * 3 * H + (H + Wd) * 2 * V
                                + 2 * B + 3 * B * V + TB * V + B * H)),
    )
    return pl.pallas_call(
        kernel,
        grid=(1,),
        in_specs=[
            pl.BlockSpec((TB, Wd), lambda i: (0, 0)),
            pl.BlockSpec((B, H), lambda i: (0, 0)),
            pl.BlockSpec((Wd, 3 * H), lambda i: (0, 0)),
            pl.BlockSpec((H, 3 * H), lambda i: (0, 0)),
            pl.BlockSpec((H + Wd, 2 * V), lambda i: (0, 0)),
            pl.BlockSpec((B, 2), lambda i: (0, 0)),
            pl.BlockSpec((3, B, V), lambda i: (0, 0, 0)),
        ],
        out_specs=(
            pl.BlockSpec((TB, V), lambda i: (0, 0)),
            pl.BlockSpec((B, H), lambda i: (0, 0)),
        ),
        out_shape=(
            jax.ShapeDtypeStruct((TB, V), jnp.float32),
            jax.ShapeDtypeStruct((B, H), jnp.float32),
        ),
        scratch_shapes=[pltpu.VMEM((TB, H), jnp.float32)],
        compiler_params=pltpu.CompilerParams(dimension_semantics=("arbitrary",)),
        cost_estimate=cost,
    )


# ----------------------------- decoder forward (wrapper around the fused kernel) -----------------------------
def decoder_forward(p, x_emb, hidden0, gamma_u, gamma_i, beta_u, beta_i, review_aspect_mask):
    T, B, Wd = x_emb.shape
    H, Att, Asp, V = conf.hidden_dim, conf.att_dim, conf.aspect_dim, conf.vocab_sz
    aspT = review_aspect_mask.T                                    # (Asp, V)

    # GRU weights packed as (in, 3H), gate order [r|z|n] (PyTorch convention; biases zero by reinit)
    wihT = p["gru_w_ih"].T                                         # (Wd, 3H)
    whhT = p["gru_w_hh"].T                                         # (H, 3H)

    # --- time-invariant folds (everything not depending on h_t or x_t) ---
    w10 = p["W10"]                                                 # (1, Att+H): key = [gamma | h]
    w10g, w10h = w10[:, :Att].T, w10[:, Att:].T                    # (Att,1), (H,1)
    ku = gamma_u @ w10g + p["b10"]                                 # (B,1) eq.10 key scalar (user)
    ki = gamma_i @ w10g + p["b10"]                                 # (B,1) eq.10 key scalar (item)
    w13T = p["W13"].T                                              # (H+Att, V): [h | a_2_t]
    w13h, w13a = w13T[:H], w13T[H:]
    gu13 = gamma_u @ w13a                                          # (B,V) eq.13 value projections
    gi13 = gamma_i @ w13a
    w12T = p["W12"].T                                              # (Asp+H+Wd, Asp): cat order [s_ui | h | x]
    w12s, w12h, w12x = w12T[:Asp], w12T[Asp:Asp + H], w12T[Asp + H:]
    # eq.12 -> torch.sparse.mm(review_aspect_mask, .) is linear end-to-end, so it folds into the head
    whout = w13h + w12h @ aspT                                     # (H,V)  fused h -> probit weight
    wxout = w12x @ aspT                                            # (Wd,V) fused x -> probit weight
    s_ui = jnp.concatenate([beta_u, beta_i], axis=1) @ p["W11"].T + p["b11"]   # (B,Asp) eq.11
    cvec = (s_ui @ w12s + p["b12"]) @ aspT + p["b13"]              # (B,V) time-invariant offset

    # stacked head weight: rows [h | x], cols [fused probit weight | eq.10 h-key | zero pad] -> (H+Wd, 2V)
    whead = jnp.concatenate([whout, wxout], axis=0)
    w10h_col = jnp.concatenate([w10h, jnp.zeros((Wd, 1), jnp.float32)], axis=0)
    whead_ext = jnp.concatenate([whead, w10h_col, jnp.zeros((H + Wd, V - 1), jnp.float32)], axis=1)

    kuki = jnp.concatenate([ku, ki], axis=1)                       # (B, 2)
    gcat = jnp.stack([gu13, gi13, cvec], axis=0)                   # (3, B, V)

    x2 = x_emb.reshape(T * B, Wd)
    word_probit, hidden_T = make_fused_decoder(T, B, Wd, H, V)(
        x2, hidden0, wihT, whhT, whead_ext, kuki, gcat)
    # matches T sequential PyTorch decoder calls: (PvWt + x_aspect_probit per step, final hidden)
    return word_probit, hidden_T                                   # (T*B, V), (B, H)


# ----------------------------- module forwards (plain-JAX glue around the kernels) -----------------------------
def _abae_attention(p, pos_rev):
    emb = p["abae_word_embedding"]
    pos_emb = emb[pos_rev]                                        # (N, S, D)
    pos_cnt = jnp.sum((pos_rev > 0).astype(jnp.float32), axis=1, keepdims=True) + 1e-6
    y_s = jnp.sum(pos_emb, axis=1) / pos_cnt
    mask = (pos_rev > 0).astype(jnp.float32)
    return abae_pallas(pos_emb, mask, y_s, p["W_M"], p["W_W"].T, p["b_W"][None, :])


def encoder_1_forward(p, user, item):
    gamma_u = p["gamma_user"][user]
    gamma_i = p["gamma_item"][item]
    beta_u = p["beta_user"][user]
    beta_i = p["beta_item"][item]
    u_vec = jnp.tanh(jnp.concatenate([gamma_u, gamma_i], axis=1) @ p["W3"].T + p["b3"])
    v_vec = jnp.tanh(jnp.concatenate([beta_u, beta_i], axis=1) @ p["W4"].T + p["b4"])
    hidden = u_vec + v_vec                                        # (B, H) == (1, B, H) squeezed
    return gamma_u, gamma_i, beta_u, beta_i, hidden


def expansion_net_forward(p, user, item, review_input, review_target, review_aspect_mask,
                          user_pos_sent, user_neg_sent, item_pos_sent, item_neg_sent):
    # batched ABAE attention: user + item positives in ONE kernel call.
    # NOTE: the ABAE reconstruction / uniqueness losses are weighted 0.0 in the original
    # objective, so that whole neg-sentence path is skipped — returned values are unchanged.
    Nu = user_pos_sent.shape[0]
    pos_all = jnp.concatenate([user_pos_sent, item_pos_sent], axis=0)
    p_t_all, _z_s_all = _abae_attention(p, pos_all)
    p_t_u, p_t_i = p_t_all[:Nu], p_t_all[Nu:]

    aspect_user = jnp.mean(p_t_u.reshape(-1, conf.user_seq_num, conf.asp_dim), axis=1)
    aspect_item = jnp.mean(p_t_i.reshape(-1, conf.item_seq_num, conf.asp_dim), axis=1)

    gamma_u, gamma_i, _beta_u, _beta_i, hidden0 = encoder_1_forward(p, user, item)
    beta_u = aspect_user
    beta_i = aspect_item

    T, B = review_input.shape
    x_emb = p["word_embedding"][review_input]                     # (T, B, word_dim)
    # TODO(synk): nn.Dropout(conf.dropout) on input_vector is identity here (eval-mode forward).

    word_probit, _hidden_T = decoder_forward(p, x_emb, hidden0, gamma_u, gamma_i,
                                             beta_u, beta_i, review_aspect_mask)   # (T*B, V)

    # F.cross_entropy with ignore_index=PAD
    tgt = review_target.reshape(-1)
    logp = jax.nn.log_softmax(word_probit, axis=1)
    nll = -jnp.take_along_axis(logp, tgt[:, None], axis=1)[:, 0]
    valid = (tgt != PAD).astype(jnp.float32)
    out_loss = nll * valid                                        # reduction='none' (ignored -> 0)
    obj = jnp.sum(out_loss) / jnp.maximum(jnp.sum(valid), 1.0)    # reduction='mean' over valid
    return out_loss, obj


# ----------------------------- main -----------------------------
if __name__ == "__main__":
    params = init_params(jax.random.PRNGKey(0))

    B = 2
    T = conf.rev_len
    ks = jax.random.split(jax.random.PRNGKey(0), 12)
    user = jax.random.randint(ks[0], (B,), 0, conf.num_users)
    item = jax.random.randint(ks[1], (B,), 0, conf.num_items)
    review_input = jax.random.randint(ks[2], (T, B), 1, conf.vocab_sz)
    review_target = jax.random.randint(ks[3], (T, B), 0, conf.vocab_sz)
    # dense stand-in for the sparse (vocab_sz, aspect_dim) review->aspect mask
    aspect_ids = jax.random.randint(ks[4], (conf.vocab_sz,), 0, conf.aspect_dim)
    review_aspect_mask = jax.nn.one_hot(aspect_ids, conf.aspect_dim, dtype=jnp.float32)
    user_pos_sent = jax.random.randint(ks[5], (B * conf.user_seq_num, conf.seq_len), 0, conf.abae_vocab_sz)
    user_neg_sent = jax.random.randint(ks[6], (B * conf.user_seq_num * conf.num_neg_sent, conf.seq_len),
                                       0, conf.abae_vocab_sz)
    item_pos_sent = jax.random.randint(ks[7], (B * conf.item_seq_num, conf.seq_len), 0, conf.abae_vocab_sz)
    item_neg_sent = jax.random.randint(ks[8], (B * conf.item_seq_num * conf.num_neg_sent, conf.seq_len),
                                       0, conf.abae_vocab_sz)

    fwd = jax.jit(expansion_net_forward)
    out_loss, obj = fwd(params, user, item, review_input, review_target, review_aspect_mask,
                        user_pos_sent, user_neg_sent, item_pos_sent, item_neg_sent)
    jax.block_until_ready((out_loss, obj))
    assert out_loss.shape == (T * B,)
    assert obj.shape == ()
    print("KERNEL_OK")
</pallas_src>

<mosaic_0001>
module attributes {stable_mosaic.version = 11 : i64} {
  func.func @kernel(%arg0: i32, %arg1: memref<8x8x16xf32, #tpu.memory_space<vmem>>, %arg2: memref<8x8xf32, #tpu.memory_space<vmem>>, %arg3: memref<8x16xf32, #tpu.memory_space<vmem>>, %arg4: memref<16x16xf32, #tpu.memory_space<vmem>>, %arg5: memref<16x8xf32, #tpu.memory_space<vmem>>, %arg6: memref<1x8xf32, #tpu.memory_space<vmem>>, %arg7: memref<8x8xf32, #tpu.memory_space<vmem>>, %arg8: memref<8x16xf32, #tpu.memory_space<vmem>>) attributes {dimension_semantics = [#tpu.dimension_semantics<arbitrary>], iteration_bounds = array<i64: 1>, scalar_prefetch = 0 : i64, scratch_operands = 0 : i64, tpu.core_type = #tpu.core_type<tc>, window_params = [{pipeline_mode = #tpu.pipeline_mode<synchronous>, transform_indices = @transform_0, window_bounds = array<i64: 8, 8, 16>}, {pipeline_mode = #tpu.pipeline_mode<synchronous>, transform_indices = @transform_1, window_bounds = array<i64: 8, 8>}, {pipeline_mode = #tpu.pipeline_mode<synchronous>, transform_indices = @transform_2, window_bounds = array<i64: 8, 16>}, {pipeline_mode = #tpu.pipeline_mode<synchronous>, transform_indices = @transform_3, window_bounds = array<i64: 16, 16>}, {pipeline_mode = #tpu.pipeline_mode<synchronous>, transform_indices = @transform_4, window_bounds = array<i64: 16, 8>}, {pipeline_mode = #tpu.pipeline_mode<synchronous>, transform_indices = @transform_5, window_bounds = array<i64: 1, 8>}, {pipeline_mode = #tpu.pipeline_mode<synchronous>, transform_indices = @transform_6, window_bounds = array<i64: 8, 8>}, {pipeline_mode = #tpu.pipeline_mode<synchronous>, transform_indices = @transform_7, window_bounds = array<i64: 8, 16>}]} {
    %c0 = arith.constant 0 : index
    %c0_0 = arith.constant 0 : index
    %c0_1 = arith.constant 0 : index
    %0 = vector.load %arg1[%c0, %c0_0, %c0_1] : memref<8x8x16xf32, #tpu.memory_space<vmem>>, vector<8x8x16xf32>
    %c0_2 = arith.constant 0 : index
    %c0_3 = arith.constant 0 : index
    %1 = vector.load %arg3[%c0_2, %c0_3] : memref<8x16xf32, #tpu.memory_space<vmem>>, vector<8x16xf32>
    %c0_4 = arith.constant 0 : index
    %c0_5 = arith.constant 0 : index
    %2 = vector.load %arg4[%c0_4, %c0_5] : memref<16x16xf32, #tpu.memory_space<vmem>>, vector<16x16xf32>
    %cst = arith.constant dense<0.000000e+00> : vector<8x16xf32>
    %3 = tpu.matmul %1, %2, %cst {dimension_numbers = #tpu.dot_dimension_numbers<[1], [0], [0], [1], [0, 0, 1, 1], [], []>} : vector<8x16xf32>, vector<16x16xf32>, vector<8x16xf32> -> vector<8x16xf32>
    %4 = vector.shape_cast %3 : vector<8x16xf32> to vector<8x1x16xf32>
    %5 = vector.broadcast %4 : vector<8x1x16xf32> to vector<8x8x16xf32>
    %6 = arith.mulf %0, %5 : vector<8x8x16xf32>
    %cst_6 = arith.constant dense<0.000000e+00> : vector<8x8xf32>
    %7 = vector.multi_reduction <add>, %6, %cst_6 [2] : vector<8x8x16xf32> to vector<8x8xf32>
    %cst_7 = arith.constant 8.000000e+01 : f32
    %8 = vector.broadcast %cst_7 : f32 to vector<8x8xf32>
    %9 = arith.cmpf olt, %7, %8 : vector<8x8xf32>
    %cst_8 = arith.constant 0.000000e+00 : f32
    %10 = vector.broadcast %cst_8 : f32 to vector<8x8xf32>
    %11 = arith.select %9, %7, %10 : vector<8x8xi1>, vector<8x8xf32>
    %12 = math.exp %11 : vector<8x8xf32>
    %c0_9 = arith.constant 0 : index
    %c0_10 = arith.constant 0 : index
    %13 = vector.load %arg2[%c0_9, %c0_10] : memref<8x8xf32, #tpu.memory_space<vmem>>, vector<8x8xf32>
    %14 = arith.mulf %12, %13 : vector<8x8xf32>
    %cst_11 = arith.constant dense<0.000000e+00> : vector<8xf32>
    %15 = vector.multi_reduction <add>, %14, %cst_11 [1] : vector<8x8xf32> to vector<8xf32>
    %16 = vector.shape_cast %15 : vector<8xf32> to vector<8x1xf32>
    %cst_12 = arith.constant 9.99999997E-7 : f32
    %17 = vector.broadcast %cst_12 : f32 to vector<8x1xf32>
    %18 = arith.addf %16, %17 : vector<8x1xf32>
    %19 = vector.broadcast %18 : vector<8x1xf32> to vector<8x8xf32>
    %20 = arith.divf %14, %19 : vector<8x8xf32>
    %21 = vector.shape_cast %20 : vector<8x8xf32> to vector<8x8x1xf32>
    %22 = vector.broadcast %21 : vector<8x8x1xf32> to vector<8x8x16xf32>
    %23 = arith.mulf %0, %22 : vector<8x8x16xf32>
    %cst_13 = arith.constant dense<0.000000e+00> : vector<8x16xf32>
    %24 = vector.multi_reduction <add>, %23, %cst_13 [1] : vector<8x8x16xf32> to vector<8x16xf32>
    %c0_14 = arith.constant 0 : index
    %c0_15 = arith.constant 0 : index
    %25 = vector.load %arg5[%c0_14, %c0_15] : memref<16x8xf32, #tpu.memory_space<vmem>>, vector<16x8xf32>
    %cst_16 = arith.constant dense<0.000000e+00> : vector<8x8xf32>
    %26 = tpu.matmul %24, %25, %cst_16 {dimension_numbers = #tpu.dot_dimension_numbers<[1], [0], [0], [1], [0, 0, 1, 1], [], []>} : vector<8x16xf32>, vector<16x8xf32>, vector<8x8xf32> -> vector<8x8xf32>
    %c0_17 = arith.constant 0 : index
    %c0_18 = arith.constant 0 : index
    %27 = vector.load %arg6[%c0_17, %c0_18] : memref<1x8xf32, #tpu.memory_space<vmem>>, vector<1x8xf32>
    %28 = vector.broadcast %27 : vector<1x8xf32> to vector<8x8xf32>
    %29 = arith.addf %26, %28 : vector<8x8xf32>
    %cst_19 = arith.constant dense<0xFF800000> : vector<8xf32>
    %30 = vector.multi_reduction <maximumf>, %29, %cst_19 [1] : vector<8x8xf32> to vector<8xf32>
    %cst_20 = arith.constant 0xFF800000 : f32
    %31 = vector.broadcast %cst_20 : f32 to vector<8xf32>
    %32 = arith.maximumf %31, %30 : vector<8xf32>
    %33 = vector.shape_cast %32 : vector<8xf32> to vector<8x1xf32>
    %34 = vector.broadcast %33 : vector<8x1xf32> to vector<8x8xf32>
    %35 = arith.subf %29, %34 : vector<8x8xf32>
    %36 = math.exp %35 : vector<8x8xf32>
    %cst_21 = arith.constant dense<0.000000e+00> : vector<8xf32>
    %37 = vector.multi_reduction <add>, %36, %cst_21 [1] : vector<8x8xf32> to vector<8xf32>
    %38 = vector.shape_cast %37 : vector<8xf32> to vector<8x1xf32>
    %39 = vector.broadcast %38 : vector<8x1xf32> to vector<8x8xf32>
    %40 = arith.divf %36, %39 : vector<8x8xf32>
    %c0_22 = arith.constant 0 : index
    %c0_23 = arith.constant 0 : index
    %41 = vector.load %arg7[%c0_22, %c0_23] : memref<8x8xf32, #tpu.memory_space<vmem>>, vector<8x8xf32>
    tpu.vector_store %arg7[%c0_22, %c0_23], %40 {strides = array<i32>} : memref<8x8xf32, #tpu.memory_space<vmem>>, vector<8x8xf32>,
    %c0_24 = arith.constant 0 : index
    %c0_25 = arith.constant 0 : index
    %42 = vector.load %arg8[%c0_24, %c0_25] : memref<8x16xf32, #tpu.memory_space<vmem>>, vector<8x16xf32>
    tpu.vector_store %arg8[%c0_24, %c0_25], %24 {strides = array<i32>} : memref<8x16xf32, #tpu.memory_space<vmem>>, vector<8x16xf32>,
    return
  }
  func.func @transform_0(%arg0: i32) -> (i32, i32, i32) {
    %c0_i32 = arith.constant 0 : i32
    %c0_i32_0 = arith.constant 0 : i32
    %c0_i32_1 = arith.constant 0 : i32
    %c0_i32_2 = arith.constant 0 : i32
    return %c0_i32, %c0_i32_0, %c0_i32_1 : i32, i32, i32
  }
  func.func @transform_1(%arg0: i32) -> (i32, i32) {
    %c0_i32 = arith.constant 0 : i32
    %c0_i32_0 = arith.constant 0 : i32
    %c0_i32_1 = arith.constant 0 : i32
    return %c0_i32, %c0_i32_0 : i32, i32
  }
  func.func @transform_2(%arg0: i32) -> (i32, i32) {
    %c0_i32 = arith.constant 0 : i32
    %c0_i32_0 = arith.constant 0 : i32
    %c0_i32_1 = arith.constant 0 : i32
    return %c0_i32, %c0_i32_0 : i32, i32
  }
  func.func @transform_3(%arg0: i32) -> (i32, i32) {
    %c0_i32 = arith.constant 0 : i32
    %c0_i32_0 = arith.constant 0 : i32
    %c0_i32_1 = arith.constant 0 : i32
    return %c0_i32, %c0_i32_0 : i32, i32
  }
  func.func @transform_4(%arg0: i32) -> (i32, i32) {
    %c0_i32 = arith.constant 0 : i32
    %c0_i32_0 = arith.constant 0 : i32
    %c0_i32_1 = arith.constant 0 : i32
    return %c0_i32, %c0_i32_0 : i32, i32
  }
  func.func @transform_5(%arg0: i32) -> (i32, i32) {
    %c0_i32 = arith.constant 0 : i32
    %c0_i32_0 = arith.constant 0 : i32
    %c0_i32_1 = arith.constant 0 : i32
    return %c0_i32, %c0_i32_0 : i32, i32
  }
  func.func @transform_6(%arg0: i32) -> (i32, i32) {
    %c0_i32 = arith.constant 0 : i32
    %c0_i32_0 = arith.constant 0 : i32
    %c0_i32_1 = arith.constant 0 : i32
    return %c0_i32, %c0_i32_0 : i32, i32
  }
  func.func @transform_7(%arg0: i32) -> (i32, i32) {
    %c0_i32 = arith.constant 0 : i32
    %c0_i32_0 = arith.constant 0 : i32
    %c0_i32_1 = arith.constant 0 : i32
    return %c0_i32, %c0_i32_0 : i32, i32
  }
}

module attributes {stable_mosaic.version = 11 : i64} {
  func.func @kernel(%arg0: i32, %arg1: memref<8x32xf32, #tpu.memory_space<vmem>>, %arg2: memref<2x32xf32, #tpu.memory_space<vmem>>, %arg3: memref<32x96xf32, #tpu.memory_space<vmem>>, %arg4: memref<32x96xf32, #tpu.memory_space<vmem>>, %arg5: memref<64x256xf32, #tpu.memory_space<vmem>>, %arg6: memref<2x2xf32, #tpu.memory_space<vmem>>, %arg7: memref<3x2x128xf32, #tpu.memory_space<vmem>>, %arg8: memref<8x128xf32, #tpu.memory_space<vmem>>, %arg9: memref<2x32xf32, #tpu.memory_space<vmem>>, %arg10: memref<8x32xf32, #tpu.memory_space<vmem>>) attributes {dimension_semantics = [#tpu.dimension_semantics<arbitrary>], iteration_bounds = array<i64: 1>, scalar_prefetch = 0 : i64, scratch_operands = 1 : i64, tpu.core_type = #tpu.core_type<tc>, window_params = [{pipeline_mode = #tpu.pipeline_mode<synchronous>, transform_indices = @transform_0, window_bounds = array<i64: 8, 32>}, {pipeline_mode = #tpu.pipeline_mode<synchronous>, transform_indices = @transform_1, window_bounds = array<i64: 2, 32>}, {pipeline_mode = #tpu.pipeline_mode<synchronous>, transform_indices = @transform_2, window_bounds = array<i64: 32, 96>}, {pipeline_mode = #tpu.pipeline_mode<synchronous>, transform_indices = @transform_3, window_bounds = array<i64: 32, 96>}, {pipeline_mode = #tpu.pipeline_mode<synchronous>, transform_indices = @transform_4, window_bounds = array<i64: 64, 256>}, {pipeline_mode = #tpu.pipeline_mode<synchronous>, transform_indices = @transform_5, window_bounds = array<i64: 2, 2>}, {pipeline_mode = #tpu.pipeline_mode<synchronous>, transform_indices = @transform_6, window_bounds = array<i64: 3, 2, 128>}, {pipeline_mode = #tpu.pipeline_mode<synchronous>, transform_indices = @transform_7, window_bounds = array<i64: 8, 128>}, {pipeline_mode = #tpu.pipeline_mode<synchronous>, transform_indices = @transform_8, window_bounds = array<i64: 2, 32>}]} {
    %c0 = arith.constant 0 : index
    %c0_0 = arith.constant 0 : index
    %0 = vector.load %arg1[%c0, %c0_0] : memref<8x32xf32, #tpu.memory_space<vmem>>, vector<8x32xf32>
    %c0_1 = arith.constant 0 : index
    %c0_2 = arith.constant 0 : index
    %1 = vector.load %arg3[%c0_1, %c0_2] : memref<32x96xf32, #tpu.memory_space<vmem>>, vector<32x96xf32>
    %cst = arith.constant dense<0.000000e+00> : vector<8x96xf32>
    %2 = tpu.matmul %0, %1, %cst {dimension_numbers = #tpu.dot_dimension_numbers<[1], [0], [0], [1], [0, 0, 1, 1], [], []>} : vector<8x32xf32>, vector<32x96xf32>, vector<8x96xf32> -> vector<8x96xf32>
    %3 = vector.extract_strided_slice %2 {offsets = [0, 0], sizes = [8, 64], strides = [1, 1]} : vector<8x96xf32> to vector<8x64xf32>
    %4 = vector.extract_strided_slice %2 {offsets = [0, 64], sizes = [8, 32], strides = [1, 1]} : vector<8x96xf32> to vector<8x32xf32>
    %c0_3 = arith.constant 0 : index
    %c0_4 = arith.constant 0 : index
    %5 = vector.load %arg4[%c0_3, %c0_4] : memref<32x96xf32, #tpu.memory_space<vmem>>, vector<32x96xf32>
    %c0_5 = arith.constant 0 : index
    %c0_6 = arith.constant 0 : index
    %6 = vector.load %arg2[%c0_5, %c0_6] : memref<2x32xf32, #tpu.memory_space<vmem>>, vector<2x32xf32>
    %cst_7 = arith.constant dense<0.000000e+00> : vector<2x96xf32>
    %7 = tpu.matmul %6, %5, %cst_7 {dimension_numbers = #tpu.dot_dimension_numbers<[1], [0], [0], [1], [0, 0, 1, 1], [], []>} : vector<2x32xf32>, vector<32x96xf32>, vector<2x96xf32> -> vector<2x96xf32>
    %8 = vector.extract_strided_slice %3 {offsets = [0, 0], sizes = [2, 64], strides = [1, 1]} : vector<8x64xf32> to vector<2x64xf32>
    %9 = vector.extract_strided_slice %7 {offsets = [0, 0], sizes = [2, 64], strides = [1, 1]} : vector<2x96xf32> to vector<2x64xf32>
    %10 = arith.addf %8, %9 : vector<2x64xf32>
    %11 = arith.negf %10 : vector<2x64xf32>
    %12 = math.exp %11 : vector<2x64xf32>
    %cst_8 = arith.constant 1.000000e+00 : f32
    %13 = vector.broadcast %cst_8 : f32 to vector<2x64xf32>
    %14 = arith.addf %13, %12 : vector<2x64xf32>
    %15 = arith.divf %13, %14 : vector<2x64xf32>
    %16 = vector.extract_strided_slice %15 {offsets = [0, 0], sizes = [2, 32], strides = [1, 1]} : vector<2x64xf32> to vector<2x32xf32>
    %17 = vector.extract_strided_slice %15 {offsets = [0, 32], sizes = [2, 32], strides = [1, 1]} : vector<2x64xf32> to vector<2x32xf32>
    %18 = vector.extract_strided_slice %4 {offsets = [0, 0], sizes = [2, 32], strides = [1, 1]} : vector<8x32xf32> to vector<2x32xf32>
    %19 = vector.extract_strided_slice %7 {offsets = [0, 64], sizes = [2, 32], strides = [1, 1]} : vector<2x96xf32> to vector<2x32xf32>
    %20 = arith.mulf %16, %19 : vector<2x32xf32>
    %21 = arith.addf %18, %20 : vector<2x32xf32>
    %22 = math.tanh %21 : vector<2x32xf32>
    %cst_9 = arith.constant 1.000000e+00 : f32
    %23 = vector.broadcast %cst_9 : f32 to vector<2x32xf32>
    %24 = arith.subf %23, %17 : vector<2x32xf32>
    %25 = arith.mulf %24, %22 : vector<2x32xf32>
    %26 = arith.mulf %17, %6 : vector<2x32xf32>
    %27 = arith.addf %25, %26 : vector<2x32xf32>
    %c0_10 = arith.constant 0 : index
    %c0_11 = arith.constant 0 : index
    %28 = vector.load %arg10[%c0_10, %c0_11] : memref<8x32xf32, #tpu.memory_space<vmem>>, vector<2x32xf32>
    tpu.vector_store %arg10[%c0_10, %c0_11], %27 {strides = array<i32>} : memref<8x32xf32, #tpu.memory_space<vmem>>, vector<2x32xf32>,
    %cst_12 = arith.constant dense<0.000000e+00> : vector<2x96xf32>
    %29 = tpu.matmul %27, %5, %cst_12 {dimension_numbers = #tpu.dot_dimension_numbers<[1], [0], [0], [1], [0, 0, 1, 1], [], []>} : vector<2x32xf32>, vector<32x96xf32>, vector<2x96xf32> -> vector<2x96xf32>
    %30 = vector.extract_strided_slice %3 {offsets = [2, 0], sizes = [2, 64], strides = [1, 1]} : vector<8x64xf32> to vector<2x64xf32>
    %31 = vector.extract_strided_slice %29 {offsets = [0, 0], sizes = [2, 64], strides = [1, 1]} : vector<2x96xf32> to vector<2x64xf32>
    %32 = arith.addf %30, %31 : vector<2x64xf32>
    %33 = arith.negf %32 : vector<2x64xf32>
    %34 = math.exp %33 : vector<2x64xf32>
    %cst_13 = arith.constant 1.000000e+00 : f32
    %35 = vector.broadcast %cst_13 : f32 to vector<2x64xf32>
    %36 = arith.addf %35, %34 : vector<2x64xf32>
    %37 = arith.divf %35, %36 : vector<2x64xf32>
    %38 = vector.extract_strided_slice %37 {offsets = [0, 0], sizes = [2, 32], strides = [1, 1]} : vector<2x64xf32> to vector<2x32xf32>
    %39 = vector.extract_strided_slice %37 {offsets = [0, 32], sizes = [2, 32], strides = [1, 1]} : vector<2x64xf32> to vector<2x32xf32>
    %40 = vector.extract_strided_slice %4 {offsets = [2, 0], sizes = [2, 32], strides = [1, 1]} : vector<8x32xf32> to vector<2x32xf32>
    %41 = vector.extract_strided_slice %29 {offsets = [0, 64], sizes = [2, 32], strides = [1, 1]} : vector<2x96xf32> to vector<2x32xf32>
    %42 = arith.mulf %38, %41 : vector<2x32xf32>
    %43 = arith.addf %40, %42 : vector<2x32xf32>
    %44 = math.tanh %43 : vector<2x32xf32>
    %cst_14 = arith.constant 1.000000e+00 : f32
    %45 = vector.broadcast %cst_14 : f32 to vector<2x32xf32>
    %46 = arith.subf %45, %39 : vector<2x32xf32>
    %47 = arith.mulf %46, %44 : vector<2x32xf32>
    %48 = arith.mulf %39, %27 : vector<2x32xf32>
    %49 = arith.addf %47, %48 : vector<2x32xf32>
    %c2 = arith.constant 2 : index
    %c0_15 = arith.constant 0 : index
    %50 = vector.load %arg10[%c2, %c0_15] : memref<8x32xf32, #tpu.memory_space<vmem>>, vector<2x32xf32>
    tpu.vector_store %arg10[%c2, %c0_15], %49 {strides = array<i32>} : memref<8x32xf32, #tpu.memory_space<vmem>>, vector<2x32xf32>,
    %cst_16 = arith.constant dense<0.000000e+00> : vector<2x96xf32>
    %51 = tpu.matmul %49, %5, %cst_16 {dimension_numbers = #tpu.dot_dimension_numbers<[1], [0], [0], [1], [0, 0, 1, 1], [], []>} : vector<2x32xf32>, vector<32x96xf32>, vector<2x96xf32> -> vector<2x96xf32>
    %52 = vector.extract_strided_slice %3 {offsets = [4, 0], sizes = [2, 64], strides = [1, 1]} : vector<8x64xf32> to vector<2x64xf32>
    %53 = vector.extract_strided_slice %51 {offsets = [0, 0], sizes = [2, 64], strides = [1, 1]} : vector<2x96xf32> to vector<2x64xf32>
    %54 = arith.addf %52, %53 : vector<2x64xf32>
    %55 = arith.negf %54 : vector<2x64xf32>
    %56 = math.exp %55 : vector<2x64xf32>
    %cst_17 = arith.constant 1.000000e+00 : f32
    %57 = vector.broadcast %cst_17 : f32 to vector<2x64xf32>
    %58 = arith.addf %57, %56 : vector<2x64xf32>
    %59 = arith.divf %57, %58 : vector<2x64xf32>
    %60 = vector.extract_strided_slice %59 {offsets = [0, 0], sizes = [2, 32], strides = [1, 1]} : vector<2x64xf32> to vector<2x32xf32>
    %61 = vector.extract_strided_slice %59 {offsets = [0, 32], sizes = [2, 32], strides = [1, 1]} : vector<2x64xf32> to vector<2x32xf32>
    %62 = vector.extract_strided_slice %4 {offsets = [4, 0], sizes = [2, 32], strides = [1, 1]} : vector<8x32xf32> to vector<2x32xf32>
    %63 = vector.extract_strided_slice %51 {offsets = [0, 64], sizes = [2, 32], strides = [1, 1]} : vector<2x96xf32> to vector<2x32xf32>
    %64 = arith.mulf %60, %63 : vector<2x32xf32>
    %65 = arith.addf %62, %64 : vector<2x32xf32>
    %66 = math.tanh %65 : vector<2x32xf32>
    %cst_18 = arith.constant 1.000000e+00 : f32
    %67 = vector.broadcast %cst_18 : f32 to vector<2x32xf32>
    %68 = arith.subf %67, %61 : vector<2x32xf32>
    %69 = arith.mulf %68, %66 : vector<2x32xf32>
    %70 = arith.mulf %61, %49 : vector<2x32xf32>
    %71 = arith.addf %69, %70 : vector<2x32xf32>
    %c4 = arith.constant 4 : index
    %c0_19 = arith.constant 0 : index
    %72 = vector.load %arg10[%c4, %c0_19] : memref<8x32xf32, #tpu.memory_space<vmem>>, vector<2x32xf32>
    tpu.vector_store %arg10[%c4, %c0_19], %71 {strides = array<i32>} : memref<8x32xf32, #tpu.memory_space<vmem>>, vector<2x32xf32>,
    %cst_20 = arith.constant dense<0.000000e+00> : vector<2x96xf32>
    %73 = tpu.matmul %71, %5, %cst_20 {dimension_numbers = #tpu.dot_dimension_numbers<[1], [0], [0], [1], [0, 0, 1, 1], [], []>} : vector<2x32xf32>, vector<32x96xf32>, vector<2x96xf32> -> vector<2x96xf32>
    %74 = vector.extract_strided_slice %3 {offsets = [6, 0], sizes = [2, 64], strides = [1, 1]} : vector<8x64xf32> to vector<2x64xf32>
    %75 = vector.extract_strided_slice %73 {offsets = [0, 0], sizes = [2, 64], strides = [1, 1]} : vector<2x96xf32> to vector<2x64xf32>
    %76 = arith.addf %74, %75 : vector<2x64xf32>
    %77 = arith.negf %76 : vector<2x64xf32>
    %78 = math.exp %77 : vector<2x64xf32>
    %cst_21 = arith.constant 1.000000e+00 : f32
    %79 = vector.broadcast %cst_21 : f32 to vector<2x64xf32>
    %80 = arith.addf %79, %78 : vector<2x64xf32>
    %81 = arith.divf %79, %80 : vector<2x64xf32>
    %82 = vector.extract_strided_slice %81 {offsets = [0, 0], sizes = [2, 32], strides = [1, 1]} : vector<2x64xf32> to vector<2x32xf32>
    %83 = vector.extract_strided_slice %81 {offsets = [0, 32], sizes = [2, 32], strides = [1, 1]} : vector<2x64xf32> to vector<2x32xf32>
    %84 = vector.extract_strided_slice %4 {offsets = [6, 0], sizes = [2, 32], strides = [1, 1]} : vector<8x32xf32> to vector<2x32xf32>
    %85 = vector.extract_strided_slice %73 {offsets = [0, 64], sizes = [2, 32], strides = [1, 1]} : vector<2x96xf32> to vector<2x32xf32>
    %86 = arith.mulf %82, %85 : vector<2x32xf32>
    %87 = arith.addf %84, %86 : vector<2x32xf32>
    %88 = math.tanh %87 : vector<2x32xf32>
    %cst_22 = arith.constant 1.000000e+00 : f32
    %89 = vector.broadcast %cst_22 : f32 to vector<2x32xf32>
    %90 = arith.subf %89, %83 : vector<2x32xf32>
    %91 = arith.mulf %90, %88 : vector<2x32xf32>
    %92 = arith.mulf %83, %71 : vector<2x32xf32>
    %93 = arith.addf %91, %92 : vector<2x32xf32>
    %c6 = arith.constant 6 : index
    %c0_23 = arith.constant 0 : index
    %94 = vector.load %arg10[%c6, %c0_23] : memref<8x32xf32, #tpu.memory_space<vmem>>, vector<2x32xf32>
    tpu.vector_store %arg10[%c6, %c0_23], %93 {strides = array<i32>} : memref<8x32xf32, #tpu.memory_space<vmem>>, vector<2x32xf32>,
    %c0_24 = arith.constant 0 : index
    %c0_25 = arith.constant 0 : index
    %95 = vector.load %arg9[%c0_24, %c0_25] : memref<2x32xf32, #tpu.memory_space<vmem>>, vector<2x32xf32>
    tpu.vector_store %arg9[%c0_24, %c0_25], %93 {strides = array<i32>} : memref<2x32xf32, #tpu.memory_space<vmem>>, vector<2x32xf32>,
    %c0_26 = arith.constant 0 : index
    %c0_27 = arith.constant 0 : index
    %96 = vector.load %arg10[%c0_26, %c0_27] : memref<8x32xf32, #tpu.memory_space<vmem>>, vector<8x32xf32>
    %97 = tpu.concatenate %96, %0 in 1 : vector<8x32xf32>, vector<8x32xf32> -> vector<8x64xf32>
    %c0_28 = arith.constant 0 : index
    %c0_29 = arith.constant 0 : index
    %98 = vector.load %arg5[%c0_28, %c0_29] : memref<64x256xf32, #tpu.memory_space<vmem>>, vector<64x256xf32>
    %cst_30 = arith.constant dense<0.000000e+00> : vector<8x256xf32>
    %99 = tpu.matmul %97, %98, %cst_30 {dimension_numbers = #tpu.dot_dimension_numbers<[1], [0], [0], [1], [0, 0, 1, 1], [], []>} : vector<8x64xf32>, vector<64x256xf32>, vector<8x256xf32> -> vector<8x256xf32>
    %100 = vector.extract_strided_slice %99 {offsets = [0, 0], sizes = [8, 128], strides = [1, 1]} : vector<8x256xf32> to vector<8x128xf32>
    %101 = vector.extract_strided_slice %99 {offsets = [0, 128], sizes = [8, 1], strides = [1, 1]} : vector<8x256xf32> to vector<8x1xf32>
    %c0_31 = arith.constant 0 : index
    %c0_32 = arith.constant 0 : index
    %102 = vector.load %arg6[%c0_31, %c0_32] : memref<2x2xf32, #tpu.memory_space<vmem>>, vector<2x1xf32>
    %c0_33 = arith.constant 0 : index
    %c1 = arith.constant 1 : index
    %103 = vector.load %arg6[%c0_33, %c1] : memref<2x2xf32, #tpu.memory_space<vmem>>, vector<2x1xf32>
    %c0_34 = arith.constant 0 : index
    %c0_35 = arith.constant 0 : index
    %c0_36 = arith.constant 0 : index
    %104 = vector.load %arg7[%c0_34, %c0_35, %c0_36] : memref<3x2x128xf32, #tpu.memory_space<vmem>>, vector<1x2x128xf32>
    %105 = vector.shape_cast %104 : vector<1x2x128xf32> to vector<2x128xf32>
    %c1_37 = arith.constant 1 : index
    %c0_38 = arith.constant 0 : index
    %c0_39 = arith.constant 0 : index
    %106 = vector.load %arg7[%c1_37, %c0_38, %c0_39] : memref<3x2x128xf32, #tpu.memory_space<vmem>>, vector<1x2x128xf32>
    %107 = vector.shape_cast %106 : vector<1x2x128xf32> to vector<2x128xf32>
    %c2_40 = arith.constant 2 : index
    %c0_41 = arith.constant 0 : index
    %c0_42 = arith.constant 0 : index
    %108 = vector.load %arg7[%c2_40, %c0_41, %c0_42] : memref<3x2x128xf32, #tpu.memory_space<vmem>>, vector<1x2x128xf32>
    %109 = vector.shape_cast %108 : vector<1x2x128xf32> to vector<2x128xf32>
    %110 = vector.extract_strided_slice %101 {offsets = [0, 0], sizes = [2, 1], strides = [1, 1]} : vector<8x1xf32> to vector<2x1xf32>
    %111 = arith.addf %102, %110 : vector<2x1xf32>
    %112 = math.tanh %111 : vector<2x1xf32>
    %113 = math.exp %112 : vector<2x1xf32>
    %114 = vector.extract_strided_slice %101 {offsets = [0, 0], sizes = [2, 1], strides = [1, 1]} : vector<8x1xf32> to vector<2x1xf32>
    %115 = arith.addf %103, %114 : vector<2x1xf32>
    %116 = math.tanh %115 : vector<2x1xf32>
    %117 = math.exp %116 : vector<2x1xf32>
    %118 = arith.addf %113, %117 : vector<2x1xf32>
    %cst_43 = arith.constant 9.99999997E-7 : f32
    %119 = vector.broadcast %cst_43 : f32 to vector<2x1xf32>
    %120 = arith.addf %118, %119 : vector<2x1xf32>
    %121 = tpu.reciprocal %120 {approx = true} : vector<2x1xf32> -> vector<2x1xf32>
    %122 = vector.extract_strided_slice %100 {offsets = [0, 0], sizes = [2, 128], strides = [1, 1]} : vector<8x128xf32> to vector<2x128xf32>
    %123 = arith.mulf %113, %121 : vector<2x1xf32>
    %124 = vector.broadcast %123 : vector<2x1xf32> to vector<2x128xf32>
    %125 = arith.mulf %124, %105 : vector<2x128xf32>
    %126 = arith.addf %122, %125 : vector<2x128xf32>
    %127 = arith.mulf %117, %121 : vector<2x1xf32>
    %128 = vector.broadcast %127 : vector<2x1xf32> to vector<2x128xf32>
    %129 = arith.mulf %128, %107 : vector<2x128xf32>
    %130 = arith.addf %126, %129 : vector<2x128xf32>
    %131 = arith.addf %130, %109 : vector<2x128xf32>
    %c0_44 = arith.constant 0 : index
    %c0_45 = arith.constant 0 : index
    %132 = vector.load %arg8[%c0_44, %c0_45] : memref<8x128xf32, #tpu.memory_space<vmem>>, vector<2x128xf32>
    tpu.vector_store %arg8[%c0_44, %c0_45], %131 {strides = array<i32>} : memref<8x128xf32, #tpu.memory_space<vmem>>, vector<2x128xf32>,
    %133 = vector.extract_strided_slice %101 {offsets = [2, 0], sizes = [2, 1], strides = [1, 1]} : vector<8x1xf32> to vector<2x1xf32>
    %134 = arith.addf %102, %133 : vector<2x1xf32>
    %135 = math.tanh %134 : vector<2x1xf32>
    %136 = math.exp %135 : vector<2x1xf32>
    %137 = vector.extract_strided_slice %101 {offsets = [2, 0], sizes = [2, 1], strides = [1, 1]} : vector<8x1xf32> to vector<2x1xf32>
    %138 = arith.addf %103, %137 : vector<2x1xf32>
    %139 = math.tanh %138 : vector<2x1xf32>
    %140 = math.exp %139 : vector<2x1xf32>
    %141 = arith.addf %136, %140 : vector<2x1xf32>
    %cst_46 = arith.constant 9.99999997E-7 : f32
    %142 = vector.broadcast %cst_46 : f32 to vector<2x1xf32>
    %143 = arith.addf %141, %142 : vector<2x1xf32>
    %144 = tpu.reciprocal %143 {approx = true} : vector<2x1xf32> -> vector<2x1xf32>
    %145 = vector.extract_strided_slice %100 {offsets = [2, 0], sizes = [2, 128], strides = [1, 1]} : vector<8x128xf32> to vector<2x128xf32>
    %146 = arith.mulf %136, %144 : vector<2x1xf32>
    %147 = vector.broadcast %146 : vector<2x1xf32> to vector<2x128xf32>
    %148 = arith.mulf %147, %105 : vector<2x128xf32>
    %149 = arith.addf %145, %148 : vector<2x128xf32>
    %150 = arith.mulf %140, %144 : vector<2x1xf32>
    %151 = vector.broadcast %150 : vector<2x1xf32> to vector<2x128xf32>
    %152 = arith.mulf %151, %107 : vector<2x128xf32>
    %153 = arith.addf %149, %152 : vector<2x128xf32>
    %154 = arith.addf %153, %109 : vector<2x128xf32>
    %c2_47 = arith.constant 2 : index
    %c0_48 = arith.constant 0 : index
    %155 = vector.load %arg8[%c2_47, %c0_48] : memref<8x128xf32, #tpu.memory_space<vmem>>, vector<2x128xf32>
    tpu.vector_store %arg8[%c2_47, %c0_48], %154 {strides = array<i32>} : memref<8x128xf32, #tpu.memory_space<vmem>>, vector<2x128xf32>,
    %156 = vector.extract_strided_slice %101 {offsets = [4, 0], sizes = [2, 1], strides = [1, 1]} : vector<8x1xf32> to vector<2x1xf32>
    %157 = arith.addf %102, %156 : vector<2x1xf32>
    %158 = math.tanh %157 : vector<2x1xf32>
    %159 = math.exp %158 : vector<2x1xf32>
    %160 = vector.extract_strided_slice %101 {offsets = [4, 0], sizes = [2, 1], strides = [1, 1]} : vector<8x1xf32> to vector<2x1xf32>
    %161 = arith.addf %103, %160 : vector<2x1xf32>
    %162 = math.tanh %161 : vector<2x1xf32>
    %163 = math.exp %162 : vector<2x1xf32>
    %164 = arith.addf %159, %163 : vector<2x1xf32>
    %cst_49 = arith.constant 9.99999997E-7 : f32
    %165 = vector.broadcast %cst_49 : f32 to vector<2x1xf32>
    %166 = arith.addf %164, %165 : vector<2x1xf32>
    %167 = tpu.reciprocal %166 {approx = true} : vector<2x1xf32> -> vector<2x1xf32>
    %168 = vector.extract_strided_slice %100 {offsets = [4, 0], sizes = [2, 128], strides = [1, 1]} : vector<8x128xf32> to vector<2x128xf32>
    %169 = arith.mulf %159, %167 : vector<2x1xf32>
    %170 = vector.broadcast %169 : vector<2x1xf32> to vector<2x128xf32>
    %171 = arith.mulf %170, %105 : vector<2x128xf32>
    %172 = arith.addf %168, %171 : vector<2x128xf32>
    %173 = arith.mulf %163, %167 : vector<2x1xf32>
    %174 = vector.broadcast %173 : vector<2x1xf32> to vector<2x128xf32>
    %175 = arith.mulf %174, %107 : vector<2x128xf32>
    %176 = arith.addf %172, %175 : vector<2x128xf32>
    %177 = arith.addf %176, %109 : vector<2x128xf32>
    %c4_50 = arith.constant 4 : index
    %c0_51 = arith.constant 0 : index
    %178 = vector.load %arg8[%c4_50, %c0_51] : memref<8x128xf32, #tpu.memory_space<vmem>>, vector<2x128xf32>
    tpu.vector_store %arg8[%c4_50, %c0_51], %177 {strides = array<i32>} : memref<8x128xf32, #tpu.memory_space<vmem>>, vector<2x128xf32>,
    %179 = vector.extract_strided_slice %101 {offsets = [6, 0], sizes = [2, 1], strides = [1, 1]} : vector<8x1xf32> to vector<2x1xf32>
    %180 = arith.addf %102, %179 : vector<2x1xf32>
    %181 = math.tanh %180 : vector<2x1xf32>
    %182 = math.exp %181 : vector<2x1xf32>
    %183 = vector.extract_strided_slice %101 {offsets = [6, 0], sizes = [2, 1], strides = [1, 1]} : vector<8x1xf32> to vector<2x1xf32>
    %184 = arith.addf %103, %183 : vector<2x1xf32>
    %185 = math.tanh %184 : vector<2x1xf32>
    %186 = math.exp %185 : vector<2x1xf32>
    %187 = arith.addf %182, %186 : vector<2x1xf32>
    %cst_52 = arith.constant 9.99999997E-7 : f32
    %188 = vector.broadcast %cst_52 : f32 to vector<2x1xf32>
    %189 = arith.addf %187, %188 : vector<2x1xf32>
    %190 = tpu.reciprocal %189 {approx = true} : vector<2x1xf32> -> vector<2x1xf32>
    %191 = vector.extract_strided_slice %100 {offsets = [6, 0], sizes = [2, 128], strides = [1, 1]} : vector<8x128xf32> to vector<2x128xf32>
    %192 = arith.mulf %182, %190 : vector<2x1xf32>
    %193 = vector.broadcast %192 : vector<2x1xf32> to vector<2x128xf32>
    %194 = arith.mulf %193, %105 : vector<2x128xf32>
    %195 = arith.addf %191, %194 : vector<2x128xf32>
    %196 = arith.mulf %186, %190 : vector<2x1xf32>
    %197 = vector.broadcast %196 : vector<2x1xf32> to vector<2x128xf32>
    %198 = arith.mulf %197, %107 : vector<2x128xf32>
    %199 = arith.addf %195, %198 : vector<2x128xf32>
    %200 = arith.addf %199, %109 : vector<2x128xf32>
    %c6_53 = arith.constant 6 : index
    %c0_54 = arith.constant 0 : index
    %201 = vector.load %arg8[%c6_53, %c0_54] : memref<8x128xf32, #tpu.memory_space<vmem>>, vector<2x128xf32>
    tpu.vector_store %arg8[%c6_53, %c0_54], %200 {strides = array<i32>} : memref<8x128xf32, #tpu.memory_space<vmem>>, vector<2x128xf32>,
    return
  }
  func.func @transform_0(%arg0: i32) -> (i32, i32) {
    %c0_i32 = arith.constant 0 : i32
    %c0_i32_0 = arith.constant 0 : i32
    %c0_i32_1 = arith.constant 0 : i32
    return %c0_i32, %c0_i32_0 : i32, i32
  }
  func.func @transform_1(%arg0: i32) -> (i32, i32) {
    %c0_i32 = arith.constant 0 : i32
    %c0_i32_0 = arith.constant 0 : i32
    %c0_i32_1 = arith.constant 0 : i32
    return %c0_i32, %c0_i32_0 : i32, i32
  }
  func.func @transform_2(%arg0: i32) -> (i32, i32) {
    %c0_i32 = arith.constant 0 : i32
    %c0_i32_0 = arith.constant 0 : i32
    %c0_i32_1 = arith.constant 0 : i32
    return %c0_i32, %c0_i32_0 : i32, i32
  }
  func.func @transform_3(%arg0: i32) -> (i32, i32) {
    %c0_i32 = arith.constant 0 : i32
    %c0_i32_0 = arith.constant 0 : i32
    %c0_i32_1 = arith.constant 0 : i32
    return %c0_i32, %c0_i32_0 : i32, i32
  }
  func.func @transform_4(%arg0: i32) -> (i32, i32) {
    %c0_i32 = arith.constant 0 : i32
    %c0_i32_0 = arith.constant 0 : i32
    %c0_i32_1 = arith.constant 0 : i32
    return %c0_i32, %c0_i32_0 : i32, i32
  }
  func.func @transform_5(%arg0: i32) -> (i32, i32) {
    %c0_i32 = arith.constant 0 : i32
    %c0_i32_0 = arith.constant 0 : i32
    %c0_i32_1 = arith.constant 0 : i32
    return %c0_i32, %c0_i32_0 : i32, i32
  }
  func.func @transform_6(%arg0: i32) -> (i32, i32, i32) {
    %c0_i32 = arith.constant 0 : i32
    %c0_i32_0 = arith.constant 0 : i32
    %c0_i32_1 = arith.constant 0 : i32
    %c0_i32_2 = arith.constant 0 : i32
    return %c0_i32, %c0_i32_0, %c0_i32_1 : i32, i32, i32
  }
  func.func @transform_7(%arg0: i32) -> (i32, i32) {
    %c0_i32 = arith.constant 0 : i32
    %c0_i32_0 = arith.constant 0 : i32
    %c0_i32_1 = arith.constant 0 : i32
    return %c0_i32, %c0_i32_0 : i32, i32
  }
  func.func @transform_8(%arg0: i32) -> (i32, i32) {
    %c0_i32 = arith.constant 0 : i32
    %c0_i32_0 = arith.constant 0 : i32
    %c0_i32_1 = arith.constant 0 : i32
    return %c0_i32, %c0_i32_0 : i32, i32
  }
}

</mosaic_0001>

<llo_original>
// kernel: expansion_net_forward.2
$region0: #{expansion_net_forward.2}
  #allocation0 [shape = 'u32[]', space=smem, size = 0x4, offset = 0x4, fixed_abs, tag = 'smem constant byte address 0x4 - core index']
  #allocation1 [shape = 'u32[144,128]{1,0:T(1,128)}', space=vmem, size = 0x12000, scoped, tag = 'internal scratch']
  %s0 = inlined_call_operand.vmem [shape: f32[8,8,16], index: 0, kind: input, shape index: {}]
  %s1 = inlined_call_operand.vmem [shape: f32[8,8], index: 1, kind: input, shape index: {}]
  %s2 = inlined_call_operand.vmem [shape: f32[8,16], index: 2, kind: input, shape index: {}]
  %s3 = inlined_call_operand.vmem [shape: f32[16,16], index: 3, kind: input, shape index: {}]
  %s4 = inlined_call_operand.vmem [shape: f32[16,8], index: 4, kind: input, shape index: {}]
  %s5 = inlined_call_operand.vmem [shape: f32[1,8], index: 5, kind: input, shape index: {}]
  %s6 = inlined_call_operand.vmem [shape: f32[8,8], index: 6, kind: output, shape index: {0}]
  %s7 = inlined_call_operand.hbm [shape: f32[8,16], index: 7, kind: output, shape index: {1}]
  %8 = xla_tuple %s6, %s7
  %s9 = sld [smem:[#allocation0]]
  $region42: #{expansion_net_forward.2} parent=0
    _
  %s11 = ssub.s32 1, %s9
  %s12 = scalar_select 0, %s11, %s9
  $region1: #{expansion_net_forward.2} parent=0
    #allocation2 [shape = 'u8[4096]{0}', space=vmem, size = 0x1000, scoped, tag = 'output window, operand 1, single buffered']
    #allocation3 [shape = 's32[1]{0}', space=sflag, size = 0x4, scoped, tag = 'scoped memory for expansion_net_forward.2']
    %13 = vsyncpa [#allocation3], 0
    // Predicated region
    $region2: #{expansion_net_forward.2} parent=1 // pred_check
      _
    $region3: #{expansion_net_forward.2} parent=1 // pred_check_branch
      %15 = sbr.rel (0) target = $region5
    $region4: #{expansion_net_forward.2} parent=1 // pred_region
      _
    $region5: #{expansion_net_forward.2} parent=1 // pred_fallthru
      _
    // Predicated region
    $region6: #{expansion_net_forward.2} parent=1 // pred_check
      _
    $region7: #{expansion_net_forward.2} parent=1 // pred_check_branch
      %17 = sbr.rel (0) target = $region9
    $region8: #{expansion_net_forward.2} parent=1 // pred_region
      _
    $region9: #{expansion_net_forward.2} parent=1 // pred_fallthru
      _
    // Predicated region
    $region10: #{expansion_net_forward.2} parent=1 // pred_check
      _
    $region11: #{expansion_net_forward.2} parent=1 // pred_check_branch
      %19 = sbr.rel (0) target = $region13
    $region12: #{expansion_net_forward.2} parent=1 // pred_region
      _
    $region13: #{expansion_net_forward.2} parent=1 // pred_fallthru
      _
    // Predicated region
    $region14: #{expansion_net_forward.2} parent=1 // pred_check
      _
    $region15: #{expansion_net_forward.2} parent=1 // pred_check_branch
      %21 = sbr.rel (0) target = $region17
    $region16: #{expansion_net_forward.2} parent=1 // pred_region
      _
    $region17: #{expansion_net_forward.2} parent=1 // pred_fallthru
      _
    // Predicated region
    $region18: #{expansion_net_forward.2} parent=1 // pred_check
      _
    $region19: #{expansion_net_forward.2} parent=1 // pred_check_branch
      %23 = sbr.rel (0) target = $region21
    $region20: #{expansion_net_forward.2} parent=1 // pred_region
      _
    $region21: #{expansion_net_forward.2} parent=1 // pred_fallthru
      _
    // Predicated region
    $region22: #{expansion_net_forward.2} parent=1 // pred_check
      _
    $region23: #{expansion_net_forward.2} parent=1 // pred_check_branch
      %25 = sbr.rel (0) target = $region25
    $region24: #{expansion_net_forward.2} parent=1 // pred_region
      _
    $region25: #{expansion_net_forward.2} parent=1 // pred_fallthru
      _
    %v26 = vld [vmem:[%s0] sm:$0xff]
    %v27 = vld [vmem:[%s0 + $0x8] sm:$0xff]
    %v28 = vld [vmem:[%s0 + $0x10] sm:$0xff]
    %v29 = vld [vmem:[%s0 + $0x18] sm:$0xff]
    %v30 = vld [vmem:[%s0 + $0x20] sm:$0xff]
    %v31 = vld [vmem:[%s0 + $0x28] sm:$0xff]
    %v32 = vld [vmem:[%s0 + $0x30] sm:$0xff]
    %v33 = vld [vmem:[%s0 + $0x38] sm:$0xff]
    %v34 = vld [vmem:[%s2] sm:$0xff]
    %v35 = vld [vmem:[%s3] sm:$0xff]
    %v36 = vld [vmem:[%s3 + $0x8] sm:$0xff]
    %vm37 = vcmask 130048
    %v39 = vsel %vm37, %v34, 0
    %41 = vmatprep.subr.mxu0 0.0
    %42 = vmatpush1.msra.mxu0 %v35
    %43 = vmatprep.subr.mxu0 0.0
    %44 = vmatpush1.msra.mxu0 %v36
    %45 = vmatprep.subr.mxu0 0.0
    %46 = vmatpush1.msra.mxu0 0.0
    %47 = vmatprep.subr.mxu0 0.0
    %48 = vmatpush1.msra.mxu0 0.0
    %49 = vmatprep.subr.mxu0 0.0
    %50 = vmatpush1.msra.mxu0 0.0
    %51 = vmatprep.subr.mxu0 0.0
    %52 = vmatpush1.msra.mxu0 0.0
    %53 = vmatprep.subr.mxu0 0.0
    %54 = vmatpush1.msra.mxu0 0.0
    %55 = vmatprep.subr.mxu0 0.0
    %56 = vmatpush1.msra.mxu0 0.0
    %57 = vmatprep.subr.mxu0 0.0
    %58 = vmatpush1.msra.mxu0 0.0
    %59 = vmatprep.subr.mxu0 0.0
    %60 = vmatpush1.msra.mxu0 0.0
    %61 = vmatprep.subr.mxu0 0.0
    %62 = vmatpush1.msra.mxu0 0.0
    %63 = vmatprep.subr.mxu0 0.0
    %64 = vmatpush1.msra.mxu0 0.0
    %65 = vmatprep.subr.mxu0 0.0
    %66 = vmatpush1.msra.mxu0 0.0
    %67 = vmatprep.subr.mxu0 0.0
    %68 = vmatpush1.msra.mxu0 0.0
    %69 = vmatprep.subr.mxu0 0.0
    %70 = vmatpush1.msra.mxu0 0.0
    %71 = vmatprep.subr.mxu0 0.0
    %72 = vmatpush1.msra.mxu0 0.0
    %73 = vmatprep.subr.mxu0 0.0
    %74 = vmatpush1.msra.mxu0 0.0
    %75 = vmatprep.subr.mxu0 0.0
    %76 = vmatpush1.msra.mxu0 0.0
    %77 = vmatprep.subr.mxu0 0.0
    %78 = vmatpush1.msra.mxu0 0.0
    %79 = vmatprep.subr.mxu0 0.0
    %80 = vmatpush1.msra.mxu0 0.0
    %81 = vmatprep.subr.mxu0 0.0
    %82 = vmatpush1.msra.mxu0 0.0
    %83 = vmatprep.subr.mxu0 0.0
    %84 = vmatpush1.msra.mxu0 0.0
    %85 = vmatprep.subr.mxu0 0.0
    %86 = vmatpush1.msra.mxu0 0.0
    %87 = vmatprep.subr.mxu0 0.0
    %88 = vmatpush1.msra.mxu0 0.0
    %89 = vmatprep.subr.mxu0 0.0
    %90 = vmatpush1.msra.mxu0 0.0
    %91 = vmatprep.subr.mxu0 0.0
    %92 = vmatpush1.msra.mxu0 0.0
    %93 = vmatprep.subr.mxu0 0.0
    %94 = vmatpush1.msra.mxu0 0.0
    %95 = vmatprep.subr.mxu0 0.0
    %96 = vmatpush1.msra.mxu0 0.0
    %97 = vmatprep.subr.mxu0 0.0
    %98 = vmatpush1.msra.mxu0 0.0
    %99 = vmatprep.subr.mxu0 0.0
    %100 = vmatpush1.msra.mxu0 0.0
    %101 = vmatprep.subr.mxu0 0.0
    %102 = vmatpush1.msra.mxu0 0.0
    %103 = vmatprep.subr.mxu0 0.0
    %104 = vmatpush1.msra.mxu0 0.0
    %105 = vmatprep.mubr.f32.mxu0 0.0
    %106 = vmatmul.mubr.f32.gmra.mrb[0].mxu0 %v39
    %v107 = vpop.f32.mrb[0].mxu0
    %v108 = vadd.f32 0.0, %v107
    %v109 = vpop.f32.mrb[0].mxu0
    %110 = vdwg.mxu0
    %v112 = vcombine.high %v108, %v108
    %v114 = vunpack.c.l.s4 1966171168
    %v115 = vunpack.c.0.s8 %v114
    %v116 = vlaneseq
    %v117 = vshrl.u32 %v116, 7
    %v118 = vsub.s32 %v115, %v117
    %v119 = vrot.slane %v108, %v118
    %v121 = vunpack.c.l.s4 1966171168
    %v122 = vunpack.c.0.s8 %v121
    %v123 = vlaneseq
    %v124 = vshrl.u32 %v123, 7
    %v125 = vsub.s32 %v122, %v124
    %v126 = vrot.slane %v112, %v125
    %v127 = vcombine.high %v119, %v119
    %v128 = vcombine.high %v126, %v126
    %v130 = vunpack.c.l.s4 1966171168
    %v131 = vunpack.c.0.s8 %v130
    %v132 = vlaneseq
    %v133 = vshrl.u32 %v132, 7
    %v134 = vsub.s32 %v131, %v133
    %v135 = vrot.slane %v119, %v134
    %v137 = vunpack.c.l.s4 1966171168
    %v138 = vunpack.c.0.s8 %v137
    %v139 = vlaneseq
    %v140 = vshrl.u32 %v139, 7
    %v141 = vsub.s32 %v138, %v140
    %v142 = vrot.slane %v126, %v141
    %v144 = vunpack.c.l.s4 1966171168
    %v145 = vunpack.c.0.s8 %v144
    %v146 = vlaneseq
    %v147 = vshrl.u32 %v146, 7
    %v148 = vsub.s32 %v145, %v147
    %v149 = vrot.slane %v127, %v148
    %v151 = vunpack.c.l.s4 1966171168
    %v152 = vunpack.c.0.s8 %v151
    %v153 = vlaneseq
    %v154 = vshrl.u32 %v153, 7
    %v155 = vsub.s32 %v152, %v154
    %v156 = vrot.slane %v128, %v155
    %v157 = vcombine.high %v135, %v135
    %v158 = vcombine.high %v142, %v142
    %v159 = vcombine.high %v149, %v149
    %v160 = vcombine.high %v156, %v156
    %v161 = vlaneseq
    %v162 = vshrl.u32 %v161, 7
    %v163 = vsub.s32 0, %v162
    %v164 = vrot.slane %v135, %v163
    %v165 = vlaneseq
    %v166 = vshrl.u32 %v165, 7
    %v167 = vsub.s32 0, %v166
    %v168 = vrot.slane %v149, %v167
    %v169 = vlaneseq
    %v170 = vshrl.u32 %v169, 7
    %v171 = vsub.s32 0, %v170
    %v172 = vrot.slane %v157, %v171
    %v173 = vlaneseq
    %v174 = vshrl.u32 %v173, 7
    %v175 = vsub.s32 0, %v174
    %v176 = vrot.slane %v159, %v175
    %v177 = vlaneseq
    %v178 = vshrl.u32 %v177, 7
    %v179 = vsub.s32 0, %v178
    %v180 = vrot.slane %v142, %v179
    %v181 = vlaneseq
    %v182 = vshrl.u32 %v181, 7
    %v183 = vsub.s32 0, %v182
    %v184 = vrot.slane %v156, %v183
    %v185 = vlaneseq
    %v186 = vshrl.u32 %v185, 7
    %v187 = vsub.s32 0, %v186
    %v188 = vrot.slane %v158, %v187
    %v189 = vlaneseq
    %v190 = vshrl.u32 %v189, 7
    %v191 = vsub.s32 0, %v190
    %v192 = vrot.slane %v160, %v191
    %v201 = vmul.f32 %v26, %v164
    %v202 = vmul.f32 %v27, %v168
    %v203 = vmul.f32 %v28, %v172
    %v204 = vmul.f32 %v29, %v176
    %v205 = vmul.f32 %v30, %v180
    %v206 = vmul.f32 %v31, %v184
    %v207 = vmul.f32 %v32, %v188
    %v208 = vmul.f32 %v33, %v192
    %v209 = vsel %vm37, %v201, 0.0
    %210 = vadd.xlane.f32.xlu0 %v209
    %v211 = vpop.xlane.xlu0 %210
    %v212 = vsel %vm37, %v202, 0.0
    %213 = vadd.xlane.f32.xlu0 %v212
    %v214 = vpop.xlane.xlu0 %213
    %v215 = vsel %vm37, %v203, 0.0
    %216 = vadd.xlane.f32.xlu0 %v215
    %v217 = vpop.xlane.xlu0 %216
    %v218 = vsel %vm37, %v204, 0.0
    %219 = vadd.xlane.f32.xlu0 %v218
    %v220 = vpop.xlane.xlu0 %219
    %v221 = vsel %vm37, %v205, 0.0
    %222 = vadd.xlane.f32.xlu0 %v221
    %v223 = vpop.xlane.xlu0 %222
    %v224 = vsel %vm37, %v206, 0.0
    %225 = vadd.xlane.f32.xlu0 %v224
    %v226 = vpop.xlane.xlu0 %225
    %v227 = vsel %vm37, %v207, 0.0
    %228 = vadd.xlane.f32.xlu0 %v227
    %v229 = vpop.xlane.xlu0 %228
    %v230 = vsel %vm37, %v208, 0.0
    %231 = vadd.xlane.f32.xlu0 %v230
    %v232 = vpop.xlane.xlu0 %231
    %vm233 = vcmp.lt.f32.partialorder %v211, 80.0
    %vm234 = vcmp.lt.f32.partialorder %v214, 80.0
    %vm235 = vcmp.lt.f32.partialorder %v217, 80.0
    %vm236 = vcmp.lt.f32.partialorder %v220, 80.0
    %vm237 = vcmp.lt.f32.partialorder %v223, 80.0
    %vm238 = vcmp.lt.f32.partialorder %v226, 80.0
    %vm239 = vcmp.lt.f32.partialorder %v229, 80.0
    %vm240 = vcmp.lt.f32.partialorder %v232, 80.0
    %v241 = vsel %vm233, %v211, 0.0
    %v242 = vsel %vm234, %v214, 0.0
    %v243 = vsel %vm235, %v217, 0.0
    %v244 = vsel %vm236, %v220, 0.0
    %v245 = vsel %vm237, %v223, 0.0
    %v246 = vsel %vm238, %v226, 0.0
    %v247 = vsel %vm239, %v229, 0.0
    %v248 = vsel %vm240, %v232, 0.0
    %v249 = vmul.f32 %v241, 1.442695
    %v250 = vpow.pop %v249
    %v251 = vmul.f32 %v242, 1.442695
    %v252 = vpow.pop %v251
    %v253 = vmul.f32 %v243, 1.442695
    %v254 = vpow.pop %v253
    %v255 = vmul.f32 %v244, 1.442695
    %v256 = vpow.pop %v255
    %v257 = vmul.f32 %v245, 1.442695
    %v258 = vpow.pop %v257
    %v259 = vmul.f32 %v246, 1.442695
    %v260 = vpow.pop %v259
    %v261 = vmul.f32 %v247, 1.442695
    %v262 = vpow.pop %v261
    %v263 = vmul.f32 %v248, 1.442695
    %v264 = vpow.pop %v263
    %v265 = vld [vmem:[%s1] sm:$0xff]
    %v267 = vlaneseq
    %v268 = vshrl.u32 %v267, 7
    %v269 = vsub.s32 0, %v268
    %v270 = vrot.slane %v265, %v269
    %272 = vbcast.lane.b32.xlu0 %v270, 256
    %v273 = vpop.permute.xlu0 %272
    %v274 = vlaneseq
    %v275 = vshrl.u32 %v274, 7
    %v276 = vsub.s32 1, %v275
    %v277 = vrot.slane %v265, %v276
    %279 = vbcast.lane.b32.xlu0 %v277, 256
    %v280 = vpop.permute.xlu0 %279
    %v281 = vlaneseq
    %v282 = vshrl.u32 %v281, 7
    %v283 = vsub.s32 2, %v282
    %v284 = vrot.slane %v265, %v283
    %286 = vbcast.lane.b32.xlu0 %v284, 256
    %v287 = vpop.permute.xlu0 %286
    %v288 = vlaneseq
    %v289 = vshrl.u32 %v288, 7
    %v290 = vsub.s32 3, %v289
    %v291 = vrot.slane %v265, %v290
    %293 = vbcast.lane.b32.xlu0 %v291, 256
    %v294 = vpop.permute.xlu0 %293
    %v295 = vlaneseq
    %v296 = vshrl.u32 %v295, 7
    %v297 = vsub.s32 4, %v296
    %v298 = vrot.slane %v265, %v297
    %300 = vbcast.lane.b32.xlu0 %v298, 256
    %v301 = vpop.permute.xlu0 %300
    %v302 = vlaneseq
    %v303 = vshrl.u32 %v302, 7
    %v304 = vsub.s32 5, %v303
    %v305 = vrot.slane %v265, %v304
    %307 = vbcast.lane.b32.xlu0 %v305, 256
    %v308 = vpop.permute.xlu0 %307
    %v309 = vlaneseq
    %v310 = vshrl.u32 %v309, 7
    %v311 = vsub.s32 6, %v310
    %v312 = vrot.slane %v265, %v311
    %314 = vbcast.lane.b32.xlu0 %v312, 256
    %v315 = vpop.permute.xlu0 %314
    %v316 = vlaneseq
    %v317 = vshrl.u32 %v316, 7
    %v318 = vsub.s32 7, %v317
    %v319 = vrot.slane %v265, %v318
    %321 = vbcast.lane.b32.xlu0 %v319, 256
    %v322 = vpop.permute.xlu0 %321
    %v331 = vmul.f32 %v250, %v273
    %v332 = vmul.f32 %v252, %v280
    %v333 = vmul.f32 %v254, %v287
    %v334 = vmul.f32 %v256, %v294
    %v335 = vmul.f32 %v258, %v301
    %v336 = vmul.f32 %v260, %v308
    %v337 = vmul.f32 %v262, %v315
    %v338 = vmul.f32 %v264, %v322
    %347 = vset.pattern.permute.xlu0 0
    %348 = vperm.xlu0 %347, %v331
    %v349 = vpop.permute.xlu0 %348
    %350 = vset.pattern.permute.xlu0 0
    %351 = vperm.xlu0 %350, %v332
    %v352 = vpop.permute.xlu0 %351
    %353 = vset.pattern.permute.xlu0 0
    %354 = vperm.xlu0 %353, %v333
    %v355 = vpop.permute.xlu0 %354
    %356 = vset.pattern.permute.xlu0 0
    %357 = vperm.xlu0 %356, %v334
    %v358 = vpop.permute.xlu0 %357
    %359 = vset.pattern.permute.xlu0 0
    %360 = vperm.xlu0 %359, %v335
    %v361 = vpop.permute.xlu0 %360
    %362 = vset.pattern.permute.xlu0 0
    %363 = vperm.xlu0 %362, %v336
    %v364 = vpop.permute.xlu0 %363
    %365 = vset.pattern.permute.xlu0 0
    %366 = vperm.xlu0 %365, %v337
    %v367 = vpop.permute.xlu0 %366
    %368 = vset.pattern.permute.xlu0 0
    %369 = vperm.xlu0 %368, %v338
    %v370 = vpop.permute.xlu0 %369
    %v371 = vlaneseq
    %v372 = vand.u32 %v371, 127
    %v373 = vlaneseq
    %v374 = vshrl.u32 %v373, 7
    %v375 = vsub.s32 %v372, %v374
    %v376 = vrot.slane %v349, %v375
    %v377 = vlaneseq
    %v378 = vshrl.u32 %v377, 7
    %v379 = vsub.s32 %v372, %v378
    %v380 = vrot.slane %v352, %v379
    %v381 = vlaneseq
    %v382 = vshrl.u32 %v381, 7
    %v383 = vsub.s32 %v372, %v382
    %v384 = vrot.slane %v355, %v383
    %v385 = vlaneseq
    %v386 = vshrl.u32 %v385, 7
    %v387 = vsub.s32 %v372, %v386
    %v388 = vrot.slane %v358, %v387
    %v389 = vlaneseq
    %v390 = vshrl.u32 %v389, 7
    %v391 = vsub.s32 %v372, %v390
    %v392 = vrot.slane %v361, %v391
    %v393 = vlaneseq
    %v394 = vshrl.u32 %v393, 7
    %v395 = vsub.s32 %v372, %v394
    %v396 = vrot.slane %v364, %v395
    %v397 = vlaneseq
    %v398 = vshrl.u32 %v397, 7
    %v399 = vsub.s32 %v372, %v398
    %v400 = vrot.slane %v367, %v399
    %v401 = vlaneseq
    %v402 = vshrl.u32 %v401, 7
    %v403 = vsub.s32 %v372, %v402
    %v404 = vrot.slane %v370, %v403
    %vm405 = vcmask 1041409
    %v406 = vsel %vm405, %v380, %v376
    %vm407 = vcmask 1042434
    %v408 = vsel %vm407, %v384, %v406
    %vm409 = vcmask 1043459
    %v410 = vsel %vm409, %v388, %v408
    %vm411 = vcmask 1044484
    %v412 = vsel %vm411, %v392, %v410
    %vm413 = vcmask 1045509
    %v414 = vsel %vm413, %v396, %v412
    %vm415 = vcmask 1046534
    %v416 = vsel %vm415, %v400, %v414
    %vm417 = vcmask 1047559
    %v418 = vsel %vm417, %v404, %v416
    %vm420 = vcmask 64512
    %v421 = vsel %vm420, %v418, 0.0
    %422 = vadd.xlane.f32.xlu0 %v421
    %v423 = vpop.xlane.xlu0 %422
    %v424 = vadd.f32 %v423, 1e-06
    %v426 = vlaneseq
    %v427 = vshrl.u32 %v426, 7
    %v428 = vsub.s32 0, %v427
    %v429 = vrot.slane %v424, %v428
    %v430 = vlaneseq
    %v431 = vshrl.u32 %v430, 7
    %v432 = vsub.s32 1, %v431
    %v433 = vrot.slane %v424, %v432
    %v434 = vlaneseq
    %v435 = vshrl.u32 %v434, 7
    %v436 = vsub.s32 2, %v435
    %v437 = vrot.slane %v424, %v436
    %v438 = vlaneseq
    %v439 = vshrl.u32 %v438, 7
    %v440 = vsub.s32 3, %v439
    %v441 = vrot.slane %v424, %v440
    %v442 = vlaneseq
    %v443 = vshrl.u32 %v442, 7
    %v444 = vsub.s32 4, %v443
    %v445 = vrot.slane %v424, %v444
    %v446 = vlaneseq
    %v447 = vshrl.u32 %v446, 7
    %v448 = vsub.s32 5, %v447
    %v449 = vrot.slane %v424, %v448
    %v450 = vlaneseq
    %v451 = vshrl.u32 %v450, 7
    %v452 = vsub.s32 6, %v451
    %v453 = vrot.slane %v424, %v452
    %v454 = vlaneseq
    %v455 = vshrl.u32 %v454, 7
    %v456 = vsub.s32 7, %v455
    %v457 = vrot.slane %v424, %v456
    %v466 = vrcp.pop %v429
    %v467 = vmul.f32 %v331, %v466
    %v468 = vrcp.pop %v433
    %v469 = vmul.f32 %v332, %v468
    %v470 = vrcp.pop %v437
    %v471 = vmul.f32 %v333, %v470
    %v472 = vrcp.pop %v441
    %v473 = vmul.f32 %v334, %v472
    %v474 = vrcp.pop %v445
    %v475 = vmul.f32 %v335, %v474
    %v476 = vrcp.pop %v449
    %v477 = vmul.f32 %v336, %v476
    %v478 = vrcp.pop %v453
    %v479 = vmul.f32 %v337, %v478
    %v480 = vrcp.pop %v457
    %v481 = vmul.f32 %v338, %v480
    %483 = vset.pattern.permute.xlu0 0
    %484 = vperm.xlu0 %483, %v467
    %v485 = vpop.permute.xlu0 %484
    %488 = vset.pattern.permute.xlu0 0
    %489 = vperm.xlu0 %488, %v469
    %v490 = vpop.permute.xlu0 %489
    %493 = vset.pattern.permute.xlu0 0
    %494 = vperm.xlu0 %493, %v471
    %v495 = vpop.permute.xlu0 %494
    %498 = vset.pattern.permute.xlu0 0
    %499 = vperm.xlu0 %498, %v473
    %v500 = vpop.permute.xlu0 %499
    %503 = vset.pattern.permute.xlu0 0
    %504 = vperm.xlu0 %503, %v475
    %v505 = vpop.permute.xlu0 %504
    %508 = vset.pattern.permute.xlu0 0
    %509 = vperm.xlu0 %508, %v477
    %v510 = vpop.permute.xlu0 %509
    %513 = vset.pattern.permute.xlu0 0
    %514 = vperm.xlu0 %513, %v479
    %v515 = vpop.permute.xlu0 %514
    %518 = vset.pattern.permute.xlu0 0
    %519 = vperm.xlu0 %518, %v481
    %v520 = vpop.permute.xlu0 %519
    %v522 = vmul.f32 %v26, %v485
    %v523 = vmul.f32 %v27, %v490
    %v524 = vmul.f32 %v28, %v495
    %v525 = vmul.f32 %v29, %v500
    %v526 = vmul.f32 %v30, %v505
    %v527 = vmul.f32 %v31, %v510
    %v528 = vmul.f32 %v32, %v515
    %v529 = vmul.f32 %v33, %v520
    %v530 = vsel %vm37, %v522, 0.0
    %v531 = vrot.slane %v530, 4
    %v532 = vadd.f32 %v530, %v531
    %v533 = vrot.slane %v532, 2
    %v534 = vadd.f32 %v532, %v533
    %v535 = vrot.slane %v534, 1
    %v536 = vadd.f32 %v534, %v535
    %v537 = vsel %vm37, %v523, 0.0
    %v538 = vrot.slane %v537, 4
    %v539 = vadd.f32 %v537, %v538
    %v540 = vrot.slane %v539, 2
    %v541 = vadd.f32 %v539, %v540
    %v542 = vrot.slane %v541, 1
    %v543 = vadd.f32 %v541, %v542
    %v544 = vsel %vm37, %v524, 0.0
    %v545 = vrot.slane %v544, 4
    %v546 = vadd.f32 %v544, %v545
    %v547 = vrot.slane %v546, 2
    %v548 = vadd.f32 %v546, %v547
    %v549 = vrot.slane %v548, 1
    %v550 = vadd.f32 %v548, %v549
    %v551 = vsel %vm37, %v525, 0.0
    %v552 = vrot.slane %v551, 4
    %v553 = vadd.f32 %v551, %v552
    %v554 = vrot.slane %v553, 2
    %v555 = vadd.f32 %v553, %v554
    %v556 = vrot.slane %v555, 1
    %v557 = vadd.f32 %v555, %v556
    %v558 = vsel %vm37, %v526, 0.0
    %v559 = vrot.slane %v558, 4
    %v560 = vadd.f32 %v558, %v559
    %v561 = vrot.slane %v560, 2
    %v562 = vadd.f32 %v560, %v561
    %v563 = vrot.slane %v562, 1
    %v564 = vadd.f32 %v562, %v563
    %v565 = vsel %vm37, %v527, 0.0
    %v566 = vrot.slane %v565, 4
    %v567 = vadd.f32 %v565, %v566
    %v568 = vrot.slane %v567, 2
    %v569 = vadd.f32 %v567, %v568
    %v570 = vrot.slane %v569, 1
    %v571 = vadd.f32 %v569, %v570
    %v572 = vsel %vm37, %v528, 0.0
    %v573 = vrot.slane %v572, 4
    %v574 = vadd.f32 %v572, %v573
    %v575 = vrot.slane %v574, 2
    %v576 = vadd.f32 %v574, %v575
    %v577 = vrot.slane %v576, 1
    %v578 = vadd.f32 %v576, %v577
    %v579 = vsel %vm37, %v529, 0.0
    %v580 = vrot.slane %v579, 4
    %v581 = vadd.f32 %v579, %v580
    %v582 = vrot.slane %v581, 2
    %v583 = vadd.f32 %v581, %v582
    %v584 = vrot.slane %v583, 1
    %v585 = vadd.f32 %v583, %v584
    %v586 = vld [vmem:[%s4] sm:$0xff]
    %v587 = vld [vmem:[%s4 + $0x8] sm:$0xff]
    %v588 = vld [vmem:[%s5] sm:$0x1]
    %v590 = vlaneseq
    %v591 = vshrl.u32 %v590, 7
    %v592 = vsub.s32 0, %v591
    %v593 = vrot.slane %v588, %v592
    %v603 = vsel %vm405, %v543, %v536
    %v604 = vsel %vm407, %v550, %v603
    %v605 = vsel %vm409, %v557, %v604
    %v606 = vsel %vm411, %v564, %v605
    %v607 = vsel %vm413, %v571, %v606
    %v608 = vsel %vm415, %v578, %v607
    %v609 = vsel %vm417, %v585, %v608
    %v610 = vsel %vm37, %v609, 0
    %612 = vmatprep.subr.mxu0 0.0
    %613 = vmatpush1.msra.mxu0 %v586
    %614 = vmatprep.subr.mxu0 0.0
    %615 = vmatpush1.msra.mxu0 %v587
    %616 = vmatprep.subr.mxu0 0.0
    %617 = vmatpush1.msra.mxu0 0.0
    %618 = vmatprep.subr.mxu0 0.0
    %619 = vmatpush1.msra.mxu0 0.0
    %620 = vmatprep.subr.mxu0 0.0
    %621 = vmatpush1.msra.mxu0 0.0
    %622 = vmatprep.subr.mxu0 0.0
    %623 = vmatpush1.msra.mxu0 0.0
    %624 = vmatprep.subr.mxu0 0.0
    %625 = vmatpush1.msra.mxu0 0.0
    %626 = vmatprep.subr.mxu0 0.0
    %627 = vmatpush1.msra.mxu0 0.0
    %628 = vmatprep.subr.mxu0 0.0
    %629 = vmatpush1.msra.mxu0 0.0
    %630 = vmatprep.subr.mxu0 0.0
    %631 = vmatpush1.msra.mxu0 0.0
    %632 = vmatprep.subr.mxu0 0.0
    %633 = vmatpush1.msra.mxu0 0.0
    %634 = vmatprep.subr.mxu0 0.0
    %635 = vmatpush1.msra.mxu0 0.0
    %636 = vmatprep.subr.mxu0 0.0
    %637 = vmatpush1.msra.mxu0 0.0
    %638 = vmatprep.subr.mxu0 0.0
    %639 = vmatpush1.msra.mxu0 0.0
    %640 = vmatprep.subr.mxu0 0.0
    %641 = vmatpush1.msra.mxu0 0.0
    %642 = vmatprep.subr.mxu0 0.0
    %643 = vmatpush1.msra.mxu0 0.0
    %644 = vmatprep.subr.mxu0 0.0
    %645 = vmatpush1.msra.mxu0 0.0
    %646 = vmatprep.subr.mxu0 0.0
    %647 = vmatpush1.msra.mxu0 0.0
    %648 = vmatprep.subr.mxu0 0.0
    %649 = vmatpush1.msra.mxu0 0.0
    %650 = vmatprep.subr.mxu0 0.0
    %651 = vmatpush1.msra.mxu0 0.0
    %652 = vmatprep.subr.mxu0 0.0
    %653 = vmatpush1.msra.mxu0 0.0
    %654 = vmatprep.subr.mxu0 0.0
    %655 = vmatpush1.msra.mxu0 0.0
    %656 = vmatprep.subr.mxu0 0.0
    %657 = vmatpush1.msra.mxu0 0.0
    %658 = vmatprep.subr.mxu0 0.0
    %659 = vmatpush1.msra.mxu0 0.0
    %660 = vmatprep.subr.mxu0 0.0
    %661 = vmatpush1.msra.mxu0 0.0
    %662 = vmatprep.subr.mxu0 0.0
    %663 = vmatpush1.msra.mxu0 0.0
    %664 = vmatprep.subr.mxu0 0.0
    %665 = vmatpush1.msra.mxu0 0.0
    %666 = vmatprep.subr.mxu0 0.0
    %667 = vmatpush1.msra.mxu0 0.0
    %668 = vmatprep.subr.mxu0 0.0
    %669 = vmatpush1.msra.mxu0 0.0
    %670 = vmatprep.subr.mxu0 0.0
    %671 = vmatpush1.msra.mxu0 0.0
    %672 = vmatprep.subr.mxu0 0.0
    %673 = vmatpush1.msra.mxu0 0.0
    %674 = vmatprep.subr.mxu0 0.0
    %675 = vmatpush1.msra.mxu0 0.0
    %676 = vmatprep.mubr.f32.mxu0 0.0
    %677 = vmatmul.mubr.f32.gmra.mrb[0].mxu0 %v610
    %v678 = vpop.f32.mrb[0].mxu0
    %v679 = vadd.f32 %v593, %v678
    %v680 = vpop.f32.mrb[0].mxu0
    %681 = vdwg.mxu0
    %v682 = vsel %vm420, %v679, -inf
    %683 = vmax.xlane.f32.xlu0 %v682
    %v684 = vpop.xlane.xlu0 %683
    %v685 = vsub.f32 %v679, %v684
    %v686 = vmul.f32 %v685, 1.442695
    %v687 = vpow.pop %v686
    %v688 = vsel %vm420, %v687, 0.0
    %689 = vadd.xlane.f32.xlu0 %v688
    %v690 = vpop.xlane.xlu0 %689
    %v691 = vrcp.pop %v690
    %v692 = vmul.f32 %v687, %v691
    %693 = vst.msk [vmem:[%s6] sm:$0xff] %vm420, %v692
    %695 = vst.msk [vmem:[#allocation2] sm:$0xff] %vm37, %v609
    // Predicated region
    $region26: #{expansion_net_forward.2} parent=1 // pred_check
      _
    $region27: #{expansion_net_forward.2} parent=1 // pred_check_branch
      %697 = sbr.rel (0) target = $region29
    $region28: #{expansion_net_forward.2} parent=1 // pred_region
      _
    $region29: #{expansion_net_forward.2} parent=1 // pred_fallthru
      _
    // Predicated region
    $region30: #{expansion_net_forward.2} parent=1 // pred_check
      _
    $region31: #{expansion_net_forward.2} parent=1 // pred_check_branch
      %699 = sbr.rel (0) target = $region33
    $region32: #{expansion_net_forward.2} parent=1 // pred_region
      %s701 = ssub.s32 128, 128
      %702 = vsyncadd [#allocation3], %s701
      %s704 = sshll.u32 [#allocation2], 4
      %s705 = int_to_ptr.vmem [resolvable:$true] %s704
      %707 = dma.vmem_to_hbm [thread:$0]  %s705, 128, %s7, [#allocation3]
    $region33: #{expansion_net_forward.2} parent=1 // pred_fallthru
      _
    // Predicated region
    $region34: #{expansion_net_forward.2} parent=1 // pred_check
      _
    $region35: #{expansion_net_forward.2} parent=1 // pred_check_branch
      %709 = sbr.rel (0) target = $region37
    $region36: #{expansion_net_forward.2} parent=1 // pred_region
      _
    $region37: #{expansion_net_forward.2} parent=1 // pred_fallthru
      _
    // Predicated region
    $region38: #{expansion_net_forward.2} parent=1 // pred_check
      _
    $region39: #{expansion_net_forward.2} parent=1 // pred_check_branch
      %711 = sbr.rel (0) target = $region41
    $region40: #{expansion_net_forward.2} parent=1 // pred_region
      %712 = dma.done [#allocation3], 128
    $region41: #{expansion_net_forward.2} parent=1 // pred_fallthru
      _
    %713 = vsyncpa [#allocation3], 1

// kernel: expansion_net_forward.3
$region0: #{expansion_net_forward.3}
  #allocation0 [shape = 'u32[]', space=smem, size = 0x4, offset = 0x4, fixed_abs, tag = 'smem constant byte address 0x4 - core index']
  #allocation1 [shape = 'u32[144,128]{1,0:T(1,128)}', space=vmem, size = 0x12000, scoped, tag = 'internal scratch']
  #allocation2 [shape = 'f32[8,32]{1,0:T(8,128)}', space=vmem, size = 0x1000, scoped, tag = 'scratch operand']
  %s0 = inlined_call_operand.vmem [shape: f32[8,32], index: 0, kind: input, shape index: {}]
  %s1 = inlined_call_operand.vmem [shape: f32[2,32], index: 1, kind: input, shape index: {}]
  %s2 = inlined_call_operand.vmem [shape: f32[32,96], index: 2, kind: input, shape index: {}]
  %s3 = inlined_call_operand.vmem [shape: f32[32,96], index: 3, kind: input, shape index: {}]
  %s4 = inlined_call_operand.vmem [shape: f32[64,256], index: 4, kind: input, shape index: {}]
  %s5 = inlined_call_operand.vmem [shape: f32[2,2], index: 5, kind: input, shape index: {}]
  %s6 = inlined_call_operand.vmem [shape: f32[3,2,128], index: 6, kind: input, shape index: {}]
  %s7 = inlined_call_operand.vmem [shape: f32[8,128], index: 7, kind: output, shape index: {0}]
  %s8 = inlined_call_operand.hbm [shape: f32[2,32], index: 8, kind: output, shape index: {1}]
  %9 = xla_tuple %s7, %s8
  %s10 = sld [smem:[#allocation0]]
  $region46: #{expansion_net_forward.3} parent=0
    _
  %s12 = ssub.s32 1, %s10
  %s13 = scalar_select 0, %s12, %s10
  $region1: #{expansion_net_forward.3} parent=0
    #allocation3 [shape = 'u8[1024]{0}', space=vmem, size = 0x400, scoped, tag = 'output window, operand 1, single buffered']
    #allocation4 [shape = 's32[1]{0}', space=sflag, size = 0x4, scoped, tag = 'scoped memory for expansion_net_forward.3']
    %14 = vsyncpa [#allocation4], 0
    // Predicated region
    $region2: #{expansion_net_forward.3} parent=1 // pred_check
      _
    $region3: #{expansion_net_forward.3} parent=1 // pred_check_branch
      %16 = sbr.rel (0) target = $region5
    $region4: #{expansion_net_forward.3} parent=1 // pred_region
      _
    $region5: #{expansion_net_forward.3} parent=1 // pred_fallthru
      _
    // Predicated region
    $region6: #{expansion_net_forward.3} parent=1 // pred_check
      _
    $region7: #{expansion_net_forward.3} parent=1 // pred_check_branch
      %18 = sbr.rel (0) target = $region9
    $region8: #{expansion_net_forward.3} parent=1 // pred_region
      _
    $region9: #{expansion_net_forward.3} parent=1 // pred_fallthru
      _
    // Predicated region
    $region10: #{expansion_net_forward.3} parent=1 // pred_check
      _
    $region11: #{expansion_net_forward.3} parent=1 // pred_check_branch
      %20 = sbr.rel (0) target = $region13
    $region12: #{expansion_net_forward.3} parent=1 // pred_region
      _
    $region13: #{expansion_net_forward.3} parent=1 // pred_fallthru
      _
    // Predicated region
    $region14: #{expansion_net_forward.3} parent=1 // pred_check
      _
    $region15: #{expansion_net_forward.3} parent=1 // pred_check_branch
      %22 = sbr.rel (0) target = $region17
    $region16: #{expansion_net_forward.3} parent=1 // pred_region
      _
    $region17: #{expansion_net_forward.3} parent=1 // pred_fallthru
      _
    // Predicated region
    $region18: #{expansion_net_forward.3} parent=1 // pred_check
      _
    $region19: #{expansion_net_forward.3} parent=1 // pred_check_branch
      %24 = sbr.rel (0) target = $region21
    $region20: #{expansion_net_forward.3} parent=1 // pred_region
      _
    $region21: #{expansion_net_forward.3} parent=1 // pred_fallthru
      _
    // Predicated region
    $region22: #{expansion_net_forward.3} parent=1 // pred_check
      _
    $region23: #{expansion_net_forward.3} parent=1 // pred_check_branch
      %26 = sbr.rel (0) target = $region25
    $region24: #{expansion_net_forward.3} parent=1 // pred_region
      _
    $region25: #{expansion_net_forward.3} parent=1 // pred_fallthru
      _
    // Predicated region
    $region26: #{expansion_net_forward.3} parent=1 // pred_check
      _
    $region27: #{expansion_net_forward.3} parent=1 // pred_check_branch
      %28 = sbr.rel (0) target = $region29
    $region28: #{expansion_net_forward.3} parent=1 // pred_region
      _
    $region29: #{expansion_net_forward.3} parent=1 // pred_fallthru
      _
    %v29 = vld [vmem:[%s0] sm:$0xff]
    %v30 = vld [vmem:[%s2] sm:$0xff]
    %v31 = vld [vmem:[%s2 + $0x8] sm:$0xff]
    %v32 = vld [vmem:[%s2 + $0x10] sm:$0xff]
    %v33 = vld [vmem:[%s2 + $0x18] sm:$0xff]
    %vm34 = vcmask 261120
    %v36 = vsel %vm34, %v29, 0
    %38 = vmatprep.subr.mxu0 0.0
    %39 = vmatpush1.msra.mxu0 %v30
    %40 = vmatprep.subr.mxu0 0.0
    %41 = vmatpush1.msra.mxu0 %v31
    %42 = vmatprep.subr.mxu0 0.0
    %43 = vmatpush1.msra.mxu0 %v32
    %44 = vmatprep.subr.mxu0 0.0
    %45 = vmatpush1.msra.mxu0 %v33
    %46 = vmatprep.subr.mxu0 0.0
    %47 = vmatpush1.msra.mxu0 0.0
    %48 = vmatprep.subr.mxu0 0.0
    %49 = vmatpush1.msra.mxu0 0.0
    %50 = vmatprep.subr.mxu0 0.0
    %51 = vmatpush1.msra.mxu0 0.0
    %52 = vmatprep.subr.mxu0 0.0
    %53 = vmatpush1.msra.mxu0 0.0
    %54 = vmatprep.subr.mxu0 0.0
    %55 = vmatpush1.msra.mxu0 0.0
    %56 = vmatprep.subr.mxu0 0.0
    %57 = vmatpush1.msra.mxu0 0.0
    %58 = vmatprep.subr.mxu0 0.0
    %59 = vmatpush1.msra.mxu0 0.0
    %60 = vmatprep.subr.mxu0 0.0
    %61 = vmatpush1.msra.mxu0 0.0
    %62 = vmatprep.subr.mxu0 0.0
    %63 = vmatpush1.msra.mxu0 0.0
    %64 = vmatprep.subr.mxu0 0.0
    %65 = vmatpush1.msra.mxu0 0.0
    %66 = vmatprep.subr.mxu0 0.0
    %67 = vmatpush1.msra.mxu0 0.0
    %68 = vmatprep.subr.mxu0 0.0
    %69 = vmatpush1.msra.mxu0 0.0
    %70 = vmatprep.subr.mxu0 0.0
    %71 = vmatpush1.msra.mxu0 0.0
    %72 = vmatprep.subr.mxu0 0.0
    %73 = vmatpush1.msra.mxu0 0.0
    %74 = vmatprep.subr.mxu0 0.0
    %75 = vmatpush1.msra.mxu0 0.0
    %76 = vmatprep.subr.mxu0 0.0
    %77 = vmatpush1.msra.mxu0 0.0
    %78 = vmatprep.subr.mxu0 0.0
    %79 = vmatpush1.msra.mxu0 0.0
    %80 = vmatprep.subr.mxu0 0.0
    %81 = vmatpush1.msra.mxu0 0.0
    %82 = vmatprep.subr.mxu0 0.0
    %83 = vmatpush1.msra.mxu0 0.0
    %84 = vmatprep.subr.mxu0 0.0
    %85 = vmatpush1.msra.mxu0 0.0
    %86 = vmatprep.subr.mxu0 0.0
    %87 = vmatpush1.msra.mxu0 0.0
    %88 = vmatprep.subr.mxu0 0.0
    %89 = vmatpush1.msra.mxu0 0.0
    %90 = vmatprep.subr.mxu0 0.0
    %91 = vmatpush1.msra.mxu0 0.0
    %92 = vmatprep.subr.mxu0 0.0
    %93 = vmatpush1.msra.mxu0 0.0
    %94 = vmatprep.subr.mxu0 0.0
    %95 = vmatpush1.msra.mxu0 0.0
    %96 = vmatprep.subr.mxu0 0.0
    %97 = vmatpush1.msra.mxu0 0.0
    %98 = vmatprep.subr.mxu0 0.0
    %99 = vmatpush1.msra.mxu0 0.0
    %100 = vmatprep.subr.mxu0 0.0
    %101 = vmatpush1.msra.mxu0 0.0
    %102 = vmatprep.mubr.f32.mxu0 0.0
    %103 = vmatmul.mubr.f32.gmra.mrb[0].mxu0 %v36
    %v104 = vpop.f32.mrb[0].mxu0
    %v105 = vadd.f32 0.0, %v104
    %v106 = vpop.f32.mrb[0].mxu0
    %107 = vdwg.mxu0
    %v108 = vld [vmem:[%s3] sm:$0xff]
    %v109 = vld [vmem:[%s3 + $0x8] sm:$0xff]
    %v110 = vld [vmem:[%s3 + $0x10] sm:$0xff]
    %v111 = vld [vmem:[%s3 + $0x18] sm:$0xff]
    %v112 = vld [vmem:[%s1] sm:$0x3]
    %v114 = vsel %vm34, %v112, 0
    %116 = vmatprep.subr.mxu0 0.0
    %117 = vmatpush1.msra.mxu0 %v108
    %118 = vmatprep.subr.mxu0 0.0
    %119 = vmatpush1.msra.mxu0 %v109
    %120 = vmatprep.subr.mxu0 0.0
    %121 = vmatpush1.msra.mxu0 %v110
    %122 = vmatprep.subr.mxu0 0.0
    %123 = vmatpush1.msra.mxu0 %v111
    %124 = vmatprep.subr.mxu0 0.0
    %125 = vmatpush1.msra.mxu0 0.0
    %126 = vmatprep.subr.mxu0 0.0
    %127 = vmatpush1.msra.mxu0 0.0
    %128 = vmatprep.subr.mxu0 0.0
    %129 = vmatpush1.msra.mxu0 0.0
    %130 = vmatprep.subr.mxu0 0.0
    %131 = vmatpush1.msra.mxu0 0.0
    %132 = vmatprep.subr.mxu0 0.0
    %133 = vmatpush1.msra.mxu0 0.0
    %134 = vmatprep.subr.mxu0 0.0
    %135 = vmatpush1.msra.mxu0 0.0
    %136 = vmatprep.subr.mxu0 0.0
    %137 = vmatpush1.msra.mxu0 0.0
    %138 = vmatprep.subr.mxu0 0.0
    %139 = vmatpush1.msra.mxu0 0.0
    %140 = vmatprep.subr.mxu0 0.0
    %141 = vmatpush1.msra.mxu0 0.0
    %142 = vmatprep.subr.mxu0 0.0
    %143 = vmatpush1.msra.mxu0 0.0
    %144 = vmatprep.subr.mxu0 0.0
    %145 = vmatpush1.msra.mxu0 0.0
    %146 = vmatprep.subr.mxu0 0.0
    %147 = vmatpush1.msra.mxu0 0.0
    %148 = vmatprep.subr.mxu0 0.0
    %149 = vmatpush1.msra.mxu0 0.0
    %150 = vmatprep.subr.mxu0 0.0
    %151 = vmatpush1.msra.mxu0 0.0
    %152 = vmatprep.subr.mxu0 0.0
    %153 = vmatpush1.msra.mxu0 0.0
    %154 = vmatprep.subr.mxu0 0.0
    %155 = vmatpush1.msra.mxu0 0.0
    %156 = vmatprep.subr.mxu0 0.0
    %157 = vmatpush1.msra.mxu0 0.0
    %158 = vmatprep.subr.mxu0 0.0
    %159 = vmatpush1.msra.mxu0 0.0
    %160 = vmatprep.subr.mxu0 0.0
    %161 = vmatpush1.msra.mxu0 0.0
    %162 = vmatprep.subr.mxu0 0.0
    %163 = vmatpush1.msra.mxu0 0.0
    %164 = vmatprep.subr.mxu0 0.0
    %165 = vmatpush1.msra.mxu0 0.0
    %166 = vmatprep.subr.mxu0 0.0
    %167 = vmatpush1.msra.mxu0 0.0
    %168 = vmatprep.subr.mxu0 0.0
    %169 = vmatpush1.msra.mxu0 0.0
    %170 = vmatprep.subr.mxu0 0.0
    %171 = vmatpush1.msra.mxu0 0.0
    %172 = vmatprep.subr.mxu0 0.0
    %173 = vmatpush1.msra.mxu0 0.0
    %174 = vmatprep.subr.mxu0 0.0
    %175 = vmatpush1.msra.mxu0 0.0
    %176 = vmatprep.subr.mxu0 0.0
    %177 = vmatpush1.msra.mxu0 0.0
    %178 = vmatprep.subr.mxu0 0.0
    %179 = vmatpush1.msra.mxu0 0.0
    %180 = vmatprep.mubr.f32.mxu0 0.0
    %181 = vmatmul.mubr.f32.gmra.mrb[0].mxu0 %v114
    %v182 = vpop.f32.mrb[0].mxu0
    %v183 = vadd.f32 0.0, %v182
    %v184 = vpop.f32.mrb[0].mxu0
    %185 = vdwg.mxu0
    %v186 = vadd.f32 %v105, %v183
    %v187 = vxor.u32 %v186, 2147483648
    %v188 = vmul.f32 %v187, 1.442695
    %v189 = vpow.pop %v188
    %v190 = vadd.f32 %v189, 1.0
    %v191 = vrcp.pop %v190
    %v192 = vmul.f32 1.0, %v191
    %194 = vrot.lane.b32.xlu0 %v183, 64
    %v195 = vpop.permute.xlu0 %194
    %v197 = vmul.f32 %v192, %v195
    %199 = vrot.lane.b32.xlu0 %v197, 64
    %v200 = vpop.permute.xlu0 %199
    %v202 = vadd.f32 %v105, %v200
    %v203 = vtanh.pop %v202
    %v204 = vsub.f32 1.0, %v192
    %206 = vrot.lane.b32.xlu0 %v203, 96
    %v207 = vpop.permute.xlu0 %206
    %v209 = vmul.f32 %v204, %v207
    %210 = vrot.lane.b32.xlu0 %v112, 32
    %v211 = vpop.permute.xlu0 %210
    %v213 = vmul.f32 %v192, %v211
    %v214 = vadd.f32 %v209, %v213
    %216 = vrot.lane.b32.xlu0 %v214, 96
    %v217 = vpop.permute.xlu0 %216
    %vm219 = vcmask 254976
    %220 = vst.msk [vmem:[#allocation2] sm:$0x3] %vm219, %v217
    %v221 = vsel %vm34, %v217, 0
    %223 = vmatprep.subr.mxu0 0.0
    %224 = vmatpush1.msra.mxu0 %v108
    %225 = vmatprep.subr.mxu0 0.0
    %226 = vmatpush1.msra.mxu0 %v109
    %227 = vmatprep.subr.mxu0 0.0
    %228 = vmatpush1.msra.mxu0 %v110
    %229 = vmatprep.subr.mxu0 0.0
    %230 = vmatpush1.msra.mxu0 %v111
    %231 = vmatprep.subr.mxu0 0.0
    %232 = vmatpush1.msra.mxu0 0.0
    %233 = vmatprep.subr.mxu0 0.0
    %234 = vmatpush1.msra.mxu0 0.0
    %235 = vmatprep.subr.mxu0 0.0
    %236 = vmatpush1.msra.mxu0 0.0
    %237 = vmatprep.subr.mxu0 0.0
    %238 = vmatpush1.msra.mxu0 0.0
    %239 = vmatprep.subr.mxu0 0.0
    %240 = vmatpush1.msra.mxu0 0.0
    %241 = vmatprep.subr.mxu0 0.0
    %242 = vmatpush1.msra.mxu0 0.0
    %243 = vmatprep.subr.mxu0 0.0
    %244 = vmatpush1.msra.mxu0 0.0
    %245 = vmatprep.subr.mxu0 0.0
    %246 = vmatpush1.msra.mxu0 0.0
    %247 = vmatprep.subr.mxu0 0.0
    %248 = vmatpush1.msra.mxu0 0.0
    %249 = vmatprep.subr.mxu0 0.0
    %250 = vmatpush1.msra.mxu0 0.0
    %251 = vmatprep.subr.mxu0 0.0
    %252 = vmatpush1.msra.mxu0 0.0
    %253 = vmatprep.subr.mxu0 0.0
    %254 = vmatpush1.msra.mxu0 0.0
    %255 = vmatprep.subr.mxu0 0.0
    %256 = vmatpush1.msra.mxu0 0.0
    %257 = vmatprep.subr.mxu0 0.0
    %258 = vmatpush1.msra.mxu0 0.0
    %259 = vmatprep.subr.mxu0 0.0
    %260 = vmatpush1.msra.mxu0 0.0
    %261 = vmatprep.subr.mxu0 0.0
    %262 = vmatpush1.msra.mxu0 0.0
    %263 = vmatprep.subr.mxu0 0.0
    %264 = vmatpush1.msra.mxu0 0.0
    %265 = vmatprep.subr.mxu0 0.0
    %266 = vmatpush1.msra.mxu0 0.0
    %267 = vmatprep.subr.mxu0 0.0
    %268 = vmatpush1.msra.mxu0 0.0
    %269 = vmatprep.subr.mxu0 0.0
    %270 = vmatpush1.msra.mxu0 0.0
    %271 = vmatprep.subr.mxu0 0.0
    %272 = vmatpush1.msra.mxu0 0.0
    %273 = vmatprep.subr.mxu0 0.0
    %274 = vmatpush1.msra.mxu0 0.0
    %275 = vmatprep.subr.mxu0 0.0
    %276 = vmatpush1.msra.mxu0 0.0
    %277 = vmatprep.subr.mxu0 0.0
    %278 = vmatpush1.msra.mxu0 0.0
    %279 = vmatprep.subr.mxu0 0.0
    %280 = vmatpush1.msra.mxu0 0.0
    %281 = vmatprep.subr.mxu0 0.0
    %282 = vmatpush1.msra.mxu0 0.0
    %283 = vmatprep.subr.mxu0 0.0
    %284 = vmatpush1.msra.mxu0 0.0
    %285 = vmatprep.subr.mxu0 0.0
    %286 = vmatpush1.msra.mxu0 0.0
    %287 = vmatprep.mubr.f32.mxu0 0.0
    %288 = vmatmul.mubr.f32.gmra.mrb[0].mxu0 %v221
    %v289 = vpop.f32.mrb[0].mxu0
    %v290 = vadd.f32 0.0, %v289
    %v291 = vpop.f32.mrb[0].mxu0
    %292 = vdwg.mxu0
    %v294 = vrot.slane %v290, 6
    %v296 = vadd.f32 %v105, %v294
    %v297 = vxor.u32 %v296, 2147483648
    %v298 = vmul.f32 %v297, 1.442695
    %v299 = vpow.pop %v298
    %v300 = vadd.f32 %v299, 1.0
    %v301 = vrcp.pop %v300
    %v302 = vmul.f32 1.0, %v301
    %303 = vrot.lane.b32.xlu0 %v294, 64
    %v304 = vpop.permute.xlu0 %303
    %v306 = vmul.f32 %v302, %v304
    %308 = vrot.lane.b32.xlu0 %v306, 64
    %v309 = vpop.permute.xlu0 %308
    %v311 = vadd.f32 %v105, %v309
    %v312 = vtanh.pop %v311
    %v313 = vsub.f32 1.0, %v302
    %315 = vrot.lane.b32.xlu0 %v312, 96
    %v316 = vpop.permute.xlu0 %315
    %v318 = vmul.f32 %v313, %v316
    %v319 = vrot.slane %v214, 6
    %v321 = vmul.f32 %v302, %v319
    %v322 = vadd.f32 %v318, %v321
    %324 = vrot.lane.b32.xlu0 %v322, 96
    %v325 = vpop.permute.xlu0 %324
    %vm327 = vcmask 257026
    %328 = vst.msk [vmem:[#allocation2] sm:$0xc] %vm327, %v325
    %v329 = vrot.slane %v322, 2
    %330 = vrot.lane.b32.xlu0 %v329, 96
    %v331 = vpop.permute.xlu0 %330
    %v332 = vsel %vm34, %v331, 0
    %334 = vmatprep.subr.mxu0 0.0
    %335 = vmatpush1.msra.mxu0 %v108
    %336 = vmatprep.subr.mxu0 0.0
    %337 = vmatpush1.msra.mxu0 %v109
    %338 = vmatprep.subr.mxu0 0.0
    %339 = vmatpush1.msra.mxu0 %v110
    %340 = vmatprep.subr.mxu0 0.0
    %341 = vmatpush1.msra.mxu0 %v111
    %342 = vmatprep.subr.mxu0 0.0
    %343 = vmatpush1.msra.mxu0 0.0
    %344 = vmatprep.subr.mxu0 0.0
    %345 = vmatpush1.msra.mxu0 0.0
    %346 = vmatprep.subr.mxu0 0.0
    %347 = vmatpush1.msra.mxu0 0.0
    %348 = vmatprep.subr.mxu0 0.0
    %349 = vmatpush1.msra.mxu0 0.0
    %350 = vmatprep.subr.mxu0 0.0
    %351 = vmatpush1.msra.mxu0 0.0
    %352 = vmatprep.subr.mxu0 0.0
    %353 = vmatpush1.msra.mxu0 0.0
    %354 = vmatprep.subr.mxu0 0.0
    %355 = vmatpush1.msra.mxu0 0.0
    %356 = vmatprep.subr.mxu0 0.0
    %357 = vmatpush1.msra.mxu0 0.0
    %358 = vmatprep.subr.mxu0 0.0
    %359 = vmatpush1.msra.mxu0 0.0
    %360 = vmatprep.subr.mxu0 0.0
    %361 = vmatpush1.msra.mxu0 0.0
    %362 = vmatprep.subr.mxu0 0.0
    %363 = vmatpush1.msra.mxu0 0.0
    %364 = vmatprep.subr.mxu0 0.0
    %365 = vmatpush1.msra.mxu0 0.0
    %366 = vmatprep.subr.mxu0 0.0
    %367 = vmatpush1.msra.mxu0 0.0
    %368 = vmatprep.subr.mxu0 0.0
    %369 = vmatpush1.msra.mxu0 0.0
    %370 = vmatprep.subr.mxu0 0.0
    %371 = vmatpush1.msra.mxu0 0.0
    %372 = vmatprep.subr.mxu0 0.0
    %373 = vmatpush1.msra.mxu0 0.0
    %374 = vmatprep.subr.mxu0 0.0
    %375 = vmatpush1.msra.mxu0 0.0
    %376 = vmatprep.subr.mxu0 0.0
    %377 = vmatpush1.msra.mxu0 0.0
    %378 = vmatprep.subr.mxu0 0.0
    %379 = vmatpush1.msra.mxu0 0.0
    %380 = vmatprep.subr.mxu0 0.0
    %381 = vmatpush1.msra.mxu0 0.0
    %382 = vmatprep.subr.mxu0 0.0
    %383 = vmatpush1.msra.mxu0 0.0
    %384 = vmatprep.subr.mxu0 0.0
    %385 = vmatpush1.msra.mxu0 0.0
    %386 = vmatprep.subr.mxu0 0.0
    %387 = vmatpush1.msra.mxu0 0.0
    %388 = vmatprep.subr.mxu0 0.0
    %389 = vmatpush1.msra.mxu0 0.0
    %390 = vmatprep.subr.mxu0 0.0
    %391 = vmatpush1.msra.mxu0 0.0
    %392 = vmatprep.subr.mxu0 0.0
    %393 = vmatpush1.msra.mxu0 0.0
    %394 = vmatprep.subr.mxu0 0.0
    %395 = vmatpush1.msra.mxu0 0.0
    %396 = vmatprep.subr.mxu0 0.0
    %397 = vmatpush1.msra.mxu0 0.0
    %398 = vmatprep.mubr.f32.mxu0 0.0
    %399 = vmatmul.mubr.f32.gmra.mrb[0].mxu0 %v332
    %v400 = vpop.f32.mrb[0].mxu0
    %v401 = vadd.f32 0.0, %v400
    %v402 = vpop.f32.mrb[0].mxu0
    %403 = vdwg.mxu0
    %v405 = vrot.slane %v401, 4
    %v407 = vadd.f32 %v105, %v405
    %v408 = vxor.u32 %v407, 2147483648
    %v409 = vmul.f32 %v408, 1.442695
    %v410 = vpow.pop %v409
    %v411 = vadd.f32 %v410, 1.0
    %v412 = vrcp.pop %v411
    %v413 = vmul.f32 1.0, %v412
    %414 = vrot.lane.b32.xlu0 %v405, 64
    %v415 = vpop.permute.xlu0 %414
    %v417 = vmul.f32 %v413, %v415
    %419 = vrot.lane.b32.xlu0 %v417, 64
    %v420 = vpop.permute.xlu0 %419
    %v422 = vadd.f32 %v105, %v420
    %v423 = vtanh.pop %v422
    %v424 = vsub.f32 1.0, %v413
    %426 = vrot.lane.b32.xlu0 %v423, 96
    %v427 = vpop.permute.xlu0 %426
    %v429 = vmul.f32 %v424, %v427
    %v430 = vrot.slane %v322, 6
    %v432 = vmul.f32 %v413, %v430
    %v433 = vadd.f32 %v429, %v432
    %435 = vrot.lane.b32.xlu0 %v433, 96
    %v436 = vpop.permute.xlu0 %435
    %vm438 = vcmask 259076
    %439 = vst.msk [vmem:[#allocation2] sm:$0x30] %vm438, %v436
    %v440 = vrot.slane %v433, 4
    %441 = vrot.lane.b32.xlu0 %v440, 96
    %v442 = vpop.permute.xlu0 %441
    %v443 = vsel %vm34, %v442, 0
    %445 = vmatprep.subr.mxu0 0.0
    %446 = vmatpush1.msra.mxu0 %v108
    %447 = vmatprep.subr.mxu0 0.0
    %448 = vmatpush1.msra.mxu0 %v109
    %449 = vmatprep.subr.mxu0 0.0
    %450 = vmatpush1.msra.mxu0 %v110
    %451 = vmatprep.subr.mxu0 0.0
    %452 = vmatpush1.msra.mxu0 %v111
    %453 = vmatprep.subr.mxu0 0.0
    %454 = vmatpush1.msra.mxu0 0.0
    %455 = vmatprep.subr.mxu0 0.0
    %456 = vmatpush1.msra.mxu0 0.0
    %457 = vmatprep.subr.mxu0 0.0
    %458 = vmatpush1.msra.mxu0 0.0
    %459 = vmatprep.subr.mxu0 0.0
    %460 = vmatpush1.msra.mxu0 0.0
    %461 = vmatprep.subr.mxu0 0.0
    %462 = vmatpush1.msra.mxu0 0.0
    %463 = vmatprep.subr.mxu0 0.0
    %464 = vmatpush1.msra.mxu0 0.0
    %465 = vmatprep.subr.mxu0 0.0
    %466 = vmatpush1.msra.mxu0 0.0
    %467 = vmatprep.subr.mxu0 0.0
    %468 = vmatpush1.msra.mxu0 0.0
    %469 = vmatprep.subr.mxu0 0.0
    %470 = vmatpush1.msra.mxu0 0.0
    %471 = vmatprep.subr.mxu0 0.0
    %472 = vmatpush1.msra.mxu0 0.0
    %473 = vmatprep.subr.mxu0 0.0
    %474 = vmatpush1.msra.mxu0 0.0
    %475 = vmatprep.subr.mxu0 0.0
    %476 = vmatpush1.msra.mxu0 0.0
    %477 = vmatprep.subr.mxu0 0.0
    %478 = vmatpush1.msra.mxu0 0.0
    %479 = vmatprep.subr.mxu0 0.0
    %480 = vmatpush1.msra.mxu0 0.0
    %481 = vmatprep.subr.mxu0 0.0
    %482 = vmatpush1.msra.mxu0 0.0
    %483 = vmatprep.subr.mxu0 0.0
    %484 = vmatpush1.msra.mxu0 0.0
    %485 = vmatprep.subr.mxu0 0.0
    %486 = vmatpush1.msra.mxu0 0.0
    %487 = vmatprep.subr.mxu0 0.0
    %488 = vmatpush1.msra.mxu0 0.0
    %489 = vmatprep.subr.mxu0 0.0
    %490 = vmatpush1.msra.mxu0 0.0
    %491 = vmatprep.subr.mxu0 0.0
    %492 = vmatpush1.msra.mxu0 0.0
    %493 = vmatprep.subr.mxu0 0.0
    %494 = vmatpush1.msra.mxu0 0.0
    %495 = vmatprep.subr.mxu0 0.0
    %496 = vmatpush1.msra.mxu0 0.0
    %497 = vmatprep.subr.mxu0 0.0
    %498 = vmatpush1.msra.mxu0 0.0
    %499 = vmatprep.subr.mxu0 0.0
    %500 = vmatpush1.msra.mxu0 0.0
    %501 = vmatprep.subr.mxu0 0.0
    %502 = vmatpush1.msra.mxu0 0.0
    %503 = vmatprep.subr.mxu0 0.0
    %504 = vmatpush1.msra.mxu0 0.0
    %505 = vmatprep.subr.mxu0 0.0
    %506 = vmatpush1.msra.mxu0 0.0
    %507 = vmatprep.subr.mxu0 0.0
    %508 = vmatpush1.msra.mxu0 0.0
    %509 = vmatprep.mubr.f32.mxu0 0.0
    %510 = vmatmul.mubr.f32.gmra.mrb[0].mxu0 %v443
    %v511 = vpop.f32.mrb[0].mxu0
    %v512 = vadd.f32 0.0, %v511
    %v513 = vpop.f32.mrb[0].mxu0
    %514 = vdwg.mxu0
    %v516 = vrot.slane %v512, 2
    %v518 = vadd.f32 %v105, %v516
    %v519 = vxor.u32 %v518, 2147483648
    %v520 = vmul.f32 %v519, 1.442695
    %v521 = vpow.pop %v520
    %v522 = vadd.f32 %v521, 1.0
    %v523 = vrcp.pop %v522
    %v524 = vmul.f32 1.0, %v523
    %525 = vrot.lane.b32.xlu0 %v516, 64
    %v526 = vpop.permute.xlu0 %525
    %v528 = vmul.f32 %v524, %v526
    %530 = vrot.lane.b32.xlu0 %v528, 64
    %v531 = vpop.permute.xlu0 %530
    %v533 = vadd.f32 %v105, %v531
    %v534 = vtanh.pop %v533
    %v535 = vsub.f32 1.0, %v524
    %537 = vrot.lane.b32.xlu0 %v534, 96
    %v538 = vpop.permute.xlu0 %537
    %v540 = vmul.f32 %v535, %v538
    %v541 = vrot.slane %v433, 6
    %v543 = vmul.f32 %v524, %v541
    %v544 = vadd.f32 %v540, %v543
    %546 = vrot.lane.b32.xlu0 %v544, 96
    %v547 = vpop.permute.xlu0 %546
    %vm549 = vcmask 261126
    %550 = vst.msk [vmem:[#allocation2] sm:$0xc0] %vm549, %v547
    %551 = vst.msk [vmem:[#allocation3 - $0x6] sm:$0xc0] %vm549, %v547
    %v552 = vld [vmem:[#allocation2] sm:$0xff]
    %553 = vrot.lane.b32.xlu0 %v29, 32
    %v554 = vpop.permute.xlu0 %553
    %v556 = vsel %vm34, %v552, %v554
    %v557 = vld [vmem:[%s4] sm:$0xff]
    %v558 = vld [vmem:[%s4 + $0x8] sm:$0xff]
    %v559 = vld [vmem:[%s4 + $0x10] sm:$0xff]
    %v560 = vld [vmem:[%s4 + $0x18] sm:$0xff]
    %v561 = vld [vmem:[%s4 + $0x20] sm:$0xff]
    %v562 = vld [vmem:[%s4 + $0x28] sm:$0xff]
    %v563 = vld [vmem:[%s4 + $0x30] sm:$0xff]
    %v564 = vld [vmem:[%s4 + $0x38] sm:$0xff]
    %v565 = vld [vmem:[%s4 + $0x40] sm:$0xff]
    %v566 = vld [vmem:[%s4 + $0x48] sm:$0xff]
    %v567 = vld [vmem:[%s4 + $0x50] sm:$0xff]
    %v568 = vld [vmem:[%s4 + $0x58] sm:$0xff]
    %v569 = vld [vmem:[%s4 + $0x60] sm:$0xff]
    %v570 = vld [vmem:[%s4 + $0x68] sm:$0xff]
    %v571 = vld [vmem:[%s4 + $0x70] sm:$0xff]
    %v572 = vld [vmem:[%s4 + $0x78] sm:$0xff]
    %vm573 = vcmask 523264
    %v575 = vsel %vm573, %v556, 0
    %577 = vmatprep.subr.mxu0 %v558
    %578 = vmatpush1.msra.mxu0 %v557
    %579 = vmatprep.subr.mxu0 %v560
    %580 = vmatpush1.msra.mxu0 %v559
    %581 = vmatprep.subr.mxu0 %v562
    %582 = vmatpush1.msra.mxu0 %v561
    %583 = vmatprep.subr.mxu0 %v564
    %584 = vmatpush1.msra.mxu0 %v563
    %585 = vmatprep.subr.mxu0 %v566
    %586 = vmatpush1.msra.mxu0 %v565
    %587 = vmatprep.subr.mxu0 %v568
    %588 = vmatpush1.msra.mxu0 %v567
    %589 = vmatprep.subr.mxu0 %v570
    %590 = vmatpush1.msra.mxu0 %v569
    %591 = vmatprep.subr.mxu0 %v572
    %592 = vmatpush1.msra.mxu0 %v571
    %593 = vmatprep.subr.mxu0 0.0
    %594 = vmatpush1.msra.mxu0 0.0
    %595 = vmatprep.subr.mxu0 0.0
    %596 = vmatpush1.msra.mxu0 0.0
    %597 = vmatprep.subr.mxu0 0.0
    %598 = vmatpush1.msra.mxu0 0.0
    %599 = vmatprep.subr.mxu0 0.0
    %600 = vmatpush1.msra.mxu0 0.0
    %601 = vmatprep.subr.mxu0 0.0
    %602 = vmatpush1.msra.mxu0 0.0
    %603 = vmatprep.subr.mxu0 0.0
    %604 = vmatpush1.msra.mxu0 0.0
    %605 = vmatprep.subr.mxu0 0.0
    %606 = vmatpush1.msra.mxu0 0.0
    %607 = vmatprep.subr.mxu0 0.0
    %608 = vmatpush1.msra.mxu0 0.0
    %609 = vmatprep.subr.mxu0 0.0
    %610 = vmatpush1.msra.mxu0 0.0
    %611 = vmatprep.subr.mxu0 0.0
    %612 = vmatpush1.msra.mxu0 0.0
    %613 = vmatprep.subr.mxu0 0.0
    %614 = vmatpush1.msra.mxu0 0.0
    %615 = vmatprep.subr.mxu0 0.0
    %616 = vmatpush1.msra.mxu0 0.0
    %617 = vmatprep.subr.mxu0 0.0
    %618 = vmatpush1.msra.mxu0 0.0
    %619 = vmatprep.subr.mxu0 0.0
    %620 = vmatpush1.msra.mxu0 0.0
    %621 = vmatprep.subr.mxu0 0.0
    %622 = vmatpush1.msra.mxu0 0.0
    %623 = vmatprep.subr.mxu0 0.0
    %624 = vmatpush1.msra.mxu0 0.0
    %625 = vmatprep.subr.mxu0 0.0
    %626 = vmatpush1.msra.mxu0 0.0
    %627 = vmatprep.subr.mxu0 0.0
    %628 = vmatpush1.msra.mxu0 0.0
    %629 = vmatprep.subr.mxu0 0.0
    %630 = vmatpush1.msra.mxu0 0.0
    %631 = vmatprep.subr.mxu0 0.0
    %632 = vmatpush1.msra.mxu0 0.0
    %633 = vmatprep.subr.mxu0 0.0
    %634 = vmatpush1.msra.mxu0 0.0
    %635 = vmatprep.subr.mxu0 0.0
    %636 = vmatpush1.msra.mxu0 0.0
    %637 = vmatprep.subr.mxu0 0.0
    %638 = vmatpush1.msra.mxu0 0.0
    %639 = vmatprep.subr.mxu0 0.0
    %640 = vmatpush1.msra.mxu0 0.0
    %641 = vmatprep.mubr.f32.mxu0 0.0
    %642 = vmatmul.mubr.f32.gmra.mrb[0].mxu0 %v575
    %v643 = vpop.f32.mrb[0].mxu0
    %v644 = vadd.f32 0.0, %v643
    %v645 = vpop.f32.mrb[0].mxu0
    %v646 = vadd.f32 0.0, %v645
    %647 = vdwg.mxu0
    %v648 = vld [vmem:[%s5] sm:$0x3]
    %v649 = vld [vmem:[%s6] sm:$0x3]
    %s650 = scalar_lea.vmem %s6, 2
    %v651 = vld [vmem:[%s650] sm:$0x3]
    %s652 = scalar_lea.vmem %s6, 4
    %v653 = vld [vmem:[%s652] sm:$0x3]
    %v654 = vadd.f32 %v648, %v646
    %v655 = vtanh.pop %v654
    %v656 = vmul.f32 %v655, 1.442695
    %v657 = vpow.pop %v656
    %659 = vrot.lane.b32.xlu0 %v646, 1
    %v660 = vpop.permute.xlu0 %659
    %v662 = vadd.f32 %v648, %v660
    %v663 = vtanh.pop %v662
    %v664 = vmul.f32 %v663, 1.442695
    %v665 = vpow.pop %v664
    %667 = vrot.lane.b32.xlu0 %v665, 127
    %v668 = vpop.permute.xlu0 %667
    %v670 = vadd.f32 %v657, %v668
    %v671 = vadd.f32 %v670, 1e-06
    %v672 = vrcp.pop %v671
    %v673 = vmul.f32 %v657, %v672
    %675 = vset.pattern.permute.xlu0 0
    %676 = vperm.xlu0 %675, %v673
    %v677 = vpop.permute.xlu0 %676
    %v679 = vmul.f32 %v677, %v649
    %v680 = vadd.f32 %v644, %v679
    %682 = vrot.lane.b32.xlu0 %v672, 1
    %v683 = vpop.permute.xlu0 %682
    %v685 = vmul.f32 %v665, %v683
    %687 = vset.pattern.permute.xlu0 1
    %688 = vperm.xlu0 %687, %v685
    %v689 = vpop.permute.xlu0 %688
    %v691 = vmul.f32 %v689, %v651
    %v692 = vadd.f32 %v680, %v691
    %v693 = vadd.f32 %v692, %v653
    %694 = vst [vmem:[%s7] sm:$0x3] %v693
    %v695 = vrot.slane %v646, 2
    %v697 = vadd.f32 %v648, %v695
    %v698 = vtanh.pop %v697
    %v699 = vmul.f32 %v698, 1.442695
    %v700 = vpow.pop %v699
    %701 = vrot.lane.b32.xlu0 %v695, 1
    %v702 = vpop.permute.xlu0 %701
    %v704 = vadd.f32 %v648, %v702
    %v705 = vtanh.pop %v704
    %v706 = vmul.f32 %v705, 1.442695
    %v707 = vpow.pop %v706
    %709 = vrot.lane.b32.xlu0 %v707, 127
    %v710 = vpop.permute.xlu0 %709
    %v712 = vadd.f32 %v700, %v710
    %v713 = vadd.f32 %v712, 1e-06
    %v714 = vrcp.pop %v713
    %v715 = vmul.f32 %v700, %v714
    %717 = vset.pattern.permute.xlu0 0
    %718 = vperm.xlu0 %717, %v715
    %v719 = vpop.permute.xlu0 %718
    %v721 = vmul.f32 %v719, %v649
    %v723 = vrot.slane %v721, 6
    %v725 = vadd.f32 %v644, %v723
    %727 = vrot.lane.b32.xlu0 %v714, 1
    %v728 = vpop.permute.xlu0 %727
    %v730 = vmul.f32 %v707, %v728
    %732 = vset.pattern.permute.xlu0 1
    %733 = vperm.xlu0 %732, %v730
    %v734 = vpop.permute.xlu0 %733
    %v736 = vmul.f32 %v734, %v651
    %v738 = vrot.slane %v736, 6
    %v740 = vadd.f32 %v725, %v738
    %v742 = vrot.slane %v653, 6
    %v744 = vadd.f32 %v740, %v742
    %745 = vst [vmem:[%s7] sm:$0xc] %v744
    %v746 = vrot.slane %v646, 4
    %v748 = vadd.f32 %v648, %v746
    %v749 = vtanh.pop %v748
    %v750 = vmul.f32 %v749, 1.442695
    %v751 = vpow.pop %v750
    %752 = vrot.lane.b32.xlu0 %v746, 1
    %v753 = vpop.permute.xlu0 %752
    %v755 = vadd.f32 %v648, %v753
    %v756 = vtanh.pop %v755
    %v757 = vmul.f32 %v756, 1.442695
    %v758 = vpow.pop %v757
    %760 = vrot.lane.b32.xlu0 %v758, 127
    %v761 = vpop.permute.xlu0 %760
    %v763 = vadd.f32 %v751, %v761
    %v764 = vadd.f32 %v763, 1e-06
    %v765 = vrcp.pop %v764
    %v766 = vmul.f32 %v751, %v765
    %768 = vset.pattern.permute.xlu0 0
    %769 = vperm.xlu0 %768, %v766
    %v770 = vpop.permute.xlu0 %769
    %v772 = vmul.f32 %v770, %v649
    %v774 = vrot.slane %v772, 4
    %v776 = vadd.f32 %v644, %v774
    %778 = vrot.lane.b32.xlu0 %v765, 1
    %v779 = vpop.permute.xlu0 %778
    %v781 = vmul.f32 %v758, %v779
    %783 = vset.pattern.permute.xlu0 1
    %784 = vperm.xlu0 %783, %v781
    %v785 = vpop.permute.xlu0 %784
    %v787 = vmul.f32 %v785, %v651
    %v789 = vrot.slane %v787, 4
    %v791 = vadd.f32 %v776, %v789
    %v792 = vrot.slane %v653, 4
    %v794 = vadd.f32 %v791, %v792
    %795 = vst [vmem:[%s7] sm:$0x30] %v794
    %v796 = vrot.slane %v646, 6
    %v798 = vadd.f32 %v648, %v796
    %v799 = vtanh.pop %v798
    %v800 = vmul.f32 %v799, 1.442695
    %v801 = vpow.pop %v800
    %802 = vrot.lane.b32.xlu0 %v796, 1
    %v803 = vpop.permute.xlu0 %802
    %v805 = vadd.f32 %v648, %v803
    %v806 = vtanh.pop %v805
    %v807 = vmul.f32 %v806, 1.442695
    %v808 = vpow.pop %v807
    %810 = vrot.lane.b32.xlu0 %v808, 127
    %v811 = vpop.permute.xlu0 %810
    %v813 = vadd.f32 %v801, %v811
    %v814 = vadd.f32 %v813, 1e-06
    %v815 = vrcp.pop %v814
    %v816 = vmul.f32 %v801, %v815
    %818 = vset.pattern.permute.xlu0 0
    %819 = vperm.xlu0 %818, %v816
    %v820 = vpop.permute.xlu0 %819
    %v822 = vmul.f32 %v820, %v649
    %v824 = vrot.slane %v822, 2
    %v826 = vadd.f32 %v644, %v824
    %828 = vrot.lane.b32.xlu0 %v815, 1
    %v829 = vpop.permute.xlu0 %828
    %v831 = vmul.f32 %v808, %v829
    %833 = vset.pattern.permute.xlu0 1
    %834 = vperm.xlu0 %833, %v831
    %v835 = vpop.permute.xlu0 %834
    %v837 = vmul.f32 %v835, %v651
    %v839 = vrot.slane %v837, 2
    %v841 = vadd.f32 %v826, %v839
    %v842 = vrot.slane %v653, 2
    %v844 = vadd.f32 %v841, %v842
    %845 = vst [vmem:[%s7] sm:$0xc0] %v844
    // Predicated region
    $region30: #{expansion_net_forward.3} parent=1 // pred_check
      _
    $region31: #{expansion_net_forward.3} parent=1 // pred_check_branch
      %847 = sbr.rel (0) target = $region33
    $region32: #{expansion_net_forward.3} parent=1 // pred_region
      _
    $region33: #{expansion_net_forward.3} parent=1 // pred_fallthru
      _
    // Predicated region
    $region34: #{expansion_net_forward.3} parent=1 // pred_check
      _
    $region35: #{expansion_net_forward.3} parent=1 // pred_check_branch
      %849 = sbr.rel (0) target = $region37
    $region36: #{expansion_net_forward.3} parent=1 // pred_region
      %s851 = ssub.s32 32, 32
      %852 = vsyncadd [#allocation4], %s851
      %s854 = sshll.u32 [#allocation3], 4
      %s855 = int_to_ptr.vmem [resolvable:$true] %s854
      %857 = dma.vmem_to_hbm [thread:$0]  %s855, 32, %s8, [#allocation4]
    $region37: #{expansion_net_forward.3} parent=1 // pred_fallthru
      _
    // Predicated region
    $region38: #{expansion_net_forward.3} parent=1 // pred_check
      _
    $region39: #{expansion_net_forward.3} parent=1 // pred_check_branch
      %859 = sbr.rel (0) target = $region41
    $region40: #{expansion_net_forward.3} parent=1 // pred_region
      _
    $region41: #{expansion_net_forward.3} parent=1 // pred_fallthru
      _
    // Predicated region
    $region42: #{expansion_net_forward.3} parent=1 // pred_check
      _
    $region43: #{expansion_net_forward.3} parent=1 // pred_check_branch
      %861 = sbr.rel (0) target = $region45
    $region44: #{expansion_net_forward.3} parent=1 // pred_region
      %862 = dma.done [#allocation4], 32
    $region45: #{expansion_net_forward.3} parent=1 // pred_fallthru
      _
    %863 = vsyncpa [#allocation4], 1

</llo_original>
